<compile_context>
chip_gen: v7x
topology: tpu7x:2x2x1
jax: 0.10.0
libtpu: 0.0.40
codegen_flags: <defaults>
</compile_context>

<pallas_src>
import functools
import math

import jax
import jax.numpy as jnp
from jax.experimental import pallas as pl
from jax.experimental.pallas import tpu as pltpu


# ----------------------------------------------------------------------------
# Pallas kernel: pos-enc add, fused-QKV multi-head self-attention, FFN,
# 2x LayerNorm, classifier — the whole hot path for a (TB, S, E) batch tile in
# one grid step.
# ----------------------------------------------------------------------------
def _layer_norm(x, w, b, eps=1e-5):
    mu = jnp.mean(x, axis=-1, keepdims=True)
    var = jnp.mean(jnp.square(x - mu), axis=-1, keepdims=True)
    return (x - mu) * jax.lax.rsqrt(var + eps) * w + b


def encoder_kernel(x_ref, pos_ref,
                   wqkv_ref, bqkv_ref,
                   wo_ref, bo_ref,
                   w1_ref, b1_ref, w2_ref, b2_ref,
                   ln1w_ref, ln1b_ref, ln2w_ref, ln2b_ref,
                   wc_ref, bc_ref,
                   o_ref, *, num_heads):
    TB, S, E = x_ref.shape
    Dh = E // num_heads

    # PositionalEncoding (pos broadcasts over TB); sqrt(E) scale already
    # folded into the embedding in the wrapper.  Flatten to a (TB*S, E) slab
    # for all row-wise ops / matmuls.
    x = x_ref[...] + pos_ref[...]
    xf = x.reshape(TB * S, E)

    # ---- fused QKV projection: ONE (TB*S, E) x (E, 3E) matmul ----------------
    qkv = jnp.dot(xf, wqkv_ref[...],
                  preferred_element_type=jnp.float32) + bqkv_ref[...]

    # ---- multi-head attention: static head loop, batched over TB ------------
    inv_sqrt_dh = jnp.float32(1.0 / math.sqrt(Dh))
    ctx_parts = []
    for h in range(num_heads):                        # static tiny loop
        c0 = h * Dh
        qh = qkv[:, c0:c0 + Dh].reshape(TB, S, Dh)
        kh = qkv[:, E + c0:E + c0 + Dh].reshape(TB, S, Dh)
        vh = qkv[:, 2 * E + c0:2 * E + c0 + Dh].reshape(TB, S, Dh)
        # contraction on the last dims -> no explicit k transpose
        s = jnp.einsum("bqd,bkd->bqk", qh, kh,
                       preferred_element_type=jnp.float32) * inv_sqrt_dh
        m = jnp.max(s, axis=-1, keepdims=True)
        p = jnp.exp(s - m)
        p = p / jnp.sum(p, axis=-1, keepdims=True)    # exact divide (f32 match)
        ctx_h = jnp.einsum("bqk,bkd->bqd", p, vh,
                           preferred_element_type=jnp.float32)
        ctx_parts.append(ctx_h.reshape(TB * S, Dh))

    # contexts stay in vregs; one lane-axis concat, then ONE out-proj matmul
    ctx = jnp.concatenate(ctx_parts, axis=-1)         # (TB*S, E)
    attn = jnp.dot(ctx, wo_ref[...],
                   preferred_element_type=jnp.float32) + bo_ref[...]

    x1 = _layer_norm(xf + attn, ln1w_ref[...], ln1b_ref[...])

    # ---- feed forward --------------------------------------------------------
    h1 = jnp.maximum(
        jnp.dot(x1, w1_ref[...], preferred_element_type=jnp.float32) + b1_ref[...],
        0.0)
    ff = jnp.dot(h1, w2_ref[...], preferred_element_type=jnp.float32) + b2_ref[...]
    x2 = _layer_norm(x1 + ff, ln2w_ref[...], ln2b_ref[...])

    # ---- classifier: lane-dense padded output store --------------------------
    o_ref[...] = jnp.dot(x2, wc_ref[...],
                         preferred_element_type=jnp.float32) + bc_ref[...]


# ----------------------------------------------------------------------------
# Wrapper: embedding gather (batch-major, no activation transpose) + parameter
# plumbing in plain JAX; one pallas_call covers encoder layer + classifier.
# ----------------------------------------------------------------------------
def transformer_encoder_forward(tokens, params, num_heads, batch_tile=None):
    S, B = tokens.shape
    E = params["emb"].shape[1]
    out_dim = params["clf_w"].shape[0]
    OUT_PAD = ((out_dim + 127) // 128) * 128          # lane-dense output width

    # On v7x (2 TCs) pass batch_tile=B//2 so the 'parallel' axis has >=2 steps.
    TB = B if batch_tile is None else batch_tile
    assert B % TB == 0, "batch tile must divide batch"

    # glue: embedding gather done directly in batch-major (B, S, E) layout,
    # with the TokenEmbedding sqrt(E) scale folded in here (tiny tensor).
    # TODO(synk): could fuse this gather into the kernel via scalar-prefetched
    # token ids + per-row DMA; kept as a single XLA gather here.
    x_emb = params["emb"][tokens.T] * jnp.float32(math.sqrt(E))   # (B, S, E)
    pos = params["pos"][:S, 0, :]                                 # (S, E)

    # fused QKV weight/bias: (E, 3E) / (1, 3E)
    wqkv = params["in_proj_w"].T                       # (E, 3E): [Wq | Wk | Wv]
    bqkv = params["in_proj_b"].reshape(1, 3 * E)
    wo = params["out_proj_w"].T
    bo = params["out_proj_b"].reshape(1, E)
    w1 = params["linear1_w"].T
    b1 = params["linear1_b"].reshape(1, -1)
    w2 = params["linear2_w"].T
    b2 = params["linear2_b"].reshape(1, E)
    ln1w = params["ln1_w"].reshape(1, E)
    ln1b = params["ln1_b"].reshape(1, E)
    ln2w = params["ln2_w"].reshape(1, E)
    ln2b = params["ln2_b"].reshape(1, E)
    # classifier padded to a 128-lane multiple so the output store is unmasked
    wc_pad = jnp.zeros((E, OUT_PAD), jnp.float32).at[:, :out_dim].set(
        params["clf_w"].T)
    bc_pad = jnp.zeros((1, OUT_PAD), jnp.float32).at[:, :out_dim].set(
        params["clf_b"].reshape(1, -1))

    weight_args = [pos, wqkv, bqkv, wo, bo, w1, b1, w2, b2,
                   ln1w, ln1b, ln2w, ln2b, wc_pad, bc_pad]

    # Weights use the same block every step; with a multi-step grid they are
    # double-buffered by default.
    # TODO(synk): at production E/FF on v7x (64 MiB VMEM) mark these
    # pipeline_mode=pl.Buffered(1) and cast matmul operands to bf16.
    def full_spec(a):
        return pl.BlockSpec(a.shape, lambda i, _nd=a.ndim: (0,) * _nd)

    kernel = functools.partial(encoder_kernel, num_heads=num_heads)

    out_flat = pl.pallas_call(
        kernel,
        out_shape=jax.ShapeDtypeStruct((B * S, OUT_PAD), jnp.float32),
        grid=(B // TB,),
        in_specs=[pl.BlockSpec((TB, S, E), lambda i: (i, 0, 0))]
                 + [full_spec(a) for a in weight_args],
        out_specs=pl.BlockSpec((TB * S, OUT_PAD), lambda i: (i, 0)),
        compiler_params=pltpu.CompilerParams(
            dimension_semantics=("parallel",)),
    )(x_emb, *weight_args)

    # (B*S, OUT_PAD) -> (S, B, out_dim), PyTorch layout. The slice/transpose is
    # on the tiny logits only (B*S*out_dim elements).
    out = out_flat.reshape(B, S, OUT_PAD)[:, :, :out_dim]
    return jnp.transpose(out, (1, 0, 2))


# ----------------------------------------------------------------------------
# Deterministic parameter construction (shapes match the PyTorch module).
# ----------------------------------------------------------------------------
def init_params(key, vocab, emb_dim, ff_dim, max_seq_len, out_dim):
    ks = jax.random.split(key, 8)
    scale = 0.1

    # positional encoding buffer, identical formula to the PyTorch module
    den = jnp.exp(-jnp.arange(0, emb_dim, 2, dtype=jnp.float32)
                  * math.log(10000.0) / emb_dim)
    pos = jnp.arange(max_seq_len, dtype=jnp.float32).reshape(max_seq_len, 1)
    pe = jnp.zeros((max_seq_len, emb_dim), jnp.float32)
    pe = pe.at[:, 0::2].set(jnp.sin(pos * den))
    pe = pe.at[:, 1::2].set(jnp.cos(pos * den))
    pe = pe[:, None, :]                               # (max_len, 1, E)

    params = dict(
        emb=jax.random.normal(ks[0], (vocab, emb_dim), jnp.float32) * scale,
        pos=pe,
        in_proj_w=jax.random.normal(ks[1], (3 * emb_dim, emb_dim), jnp.float32) * scale,
        in_proj_b=jnp.zeros((3 * emb_dim,), jnp.float32),
        out_proj_w=jax.random.normal(ks[2], (emb_dim, emb_dim), jnp.float32) * scale,
        out_proj_b=jnp.zeros((emb_dim,), jnp.float32),
        linear1_w=jax.random.normal(ks[3], (ff_dim, emb_dim), jnp.float32) * scale,
        linear1_b=jnp.zeros((ff_dim,), jnp.float32),
        linear2_w=jax.random.normal(ks[4], (emb_dim, ff_dim), jnp.float32) * scale,
        linear2_b=jnp.zeros((emb_dim,), jnp.float32),
        ln1_w=jnp.ones((emb_dim,), jnp.float32),
        ln1_b=jnp.zeros((emb_dim,), jnp.float32),
        ln2_w=jnp.ones((emb_dim,), jnp.float32),
        ln2_b=jnp.zeros((emb_dim,), jnp.float32),
        clf_w=jax.random.normal(ks[5], (out_dim, emb_dim), jnp.float32) * scale,
        clf_b=jnp.zeros((out_dim,), jnp.float32),
    )
    return params


# ----------------------------------------------------------------------------
# Pure-JAX reference (eval-mode PyTorch semantics) for a correctness check.
# ----------------------------------------------------------------------------
def reference_forward(tokens, params, num_heads):
    S, B = tokens.shape
    E = params["emb"].shape[1]
    Dh = E // num_heads
    x = params["emb"][tokens] * math.sqrt(E) + params["pos"][:S]   # (S, B, E)

    ipw, ipb = params["in_proj_w"], params["in_proj_b"]
    q = x @ ipw[:E].T + ipb[:E]
    k = x @ ipw[E:2 * E].T + ipb[E:2 * E]
    v = x @ ipw[2 * E:].T + ipb[2 * E:]

    def split(t):  # (S,B,E) -> (B,H,S,Dh)
        return t.reshape(S, B, num_heads, Dh).transpose(1, 2, 0, 3)

    qh, kh, vh = split(q), split(k), split(v)
    s = jnp.einsum("bhsd,bhtd->bhst", qh, kh) / math.sqrt(Dh)
    p = jax.nn.softmax(s, axis=-1)
    ctx = jnp.einsum("bhst,bhtd->bhsd", p, vh)
    ctx = ctx.transpose(2, 0, 1, 3).reshape(S, B, E)
    attn = ctx @ params["out_proj_w"].T + params["out_proj_b"]

    def ln(y, w, b):
        mu = jnp.mean(y, -1, keepdims=True)
        var = jnp.mean(jnp.square(y - mu), -1, keepdims=True)
        return (y - mu) / jnp.sqrt(var + 1e-5) * w + b

    x = ln(x + attn, params["ln1_w"], params["ln1_b"])
    ff = jnp.maximum(x @ params["linear1_w"].T + params["linear1_b"], 0.0)
    ff = ff @ params["linear2_w"].T + params["linear2_b"]
    x = ln(x + ff, params["ln2_w"], params["ln2_b"])
    return x @ params["clf_w"].T + params["clf_b"]


if __name__ == "__main__":
    # small shapes consistent with the module's constructor args
    VOCAB, EMB, HEADS, FF, MAX_LEN, OUT = 16, 32, 4, 64, 64, 8
    SEQ, BATCH = 8, 2

    key = jax.random.PRNGKey(0)
    k_tok, k_par = jax.random.split(key)
    tokens = jax.random.randint(k_tok, (SEQ, BATCH), 0, VOCAB, dtype=jnp.int32)
    params = init_params(k_par, VOCAB, EMB, FF, MAX_LEN, OUT)

    out = transformer_encoder_forward(tokens, params, HEADS)
    out = jax.block_until_ready(out)

    ref = reference_forward(tokens, params, HEADS)
    assert out.shape == (SEQ, BATCH, OUT), out.shape
    assert bool(jnp.all(jnp.isfinite(out)))
    # exact-divide softmax -> tight f32 agreement with the reference
    assert bool(jnp.max(jnp.abs(out - ref)) < 1e-4), float(jnp.max(jnp.abs(out - ref)))

    print("KERNEL_OK")
</pallas_src>

<mosaic_0001>
module attributes {stable_mosaic.version = 11 : i64} {
  func.func @encoder_kernel(%arg0: i32, %arg1: memref<2x8x32xf32, #tpu.memory_space<vmem>>, %arg2: memref<8x32xf32, #tpu.memory_space<vmem>>, %arg3: memref<32x96xf32, #tpu.memory_space<vmem>>, %arg4: memref<1x96xf32, #tpu.memory_space<vmem>>, %arg5: memref<32x32xf32, #tpu.memory_space<vmem>>, %arg6: memref<1x32xf32, #tpu.memory_space<vmem>>, %arg7: memref<32x64xf32, #tpu.memory_space<vmem>>, %arg8: memref<1x64xf32, #tpu.memory_space<vmem>>, %arg9: memref<64x32xf32, #tpu.memory_space<vmem>>, %arg10: memref<1x32xf32, #tpu.memory_space<vmem>>, %arg11: memref<1x32xf32, #tpu.memory_space<vmem>>, %arg12: memref<1x32xf32, #tpu.memory_space<vmem>>, %arg13: memref<1x32xf32, #tpu.memory_space<vmem>>, %arg14: memref<1x32xf32, #tpu.memory_space<vmem>>, %arg15: memref<32x128xf32, #tpu.memory_space<vmem>>, %arg16: memref<1x128xf32, #tpu.memory_space<vmem>>, %arg17: memref<16x128xf32, #tpu.memory_space<vmem>>) attributes {dimension_semantics = [#tpu.dimension_semantics<parallel>], iteration_bounds = array<i64: 1>, scalar_prefetch = 0 : i64, scratch_operands = 0 : i64, tpu.core_type = #tpu.core_type<tc>, window_params = [{transform_indices = @transform_0, window_bounds = array<i64: 2, 8, 32>}, {pipeline_mode = #tpu.pipeline_mode<synchronous>, transform_indices = @transform_1, window_bounds = array<i64: 8, 32>}, {pipeline_mode = #tpu.pipeline_mode<synchronous>, transform_indices = @transform_2, window_bounds = array<i64: 32, 96>}, {pipeline_mode = #tpu.pipeline_mode<synchronous>, transform_indices = @transform_3, window_bounds = array<i64: 1, 96>}, {pipeline_mode = #tpu.pipeline_mode<synchronous>, transform_indices = @transform_4, window_bounds = array<i64: 32, 32>}, {pipeline_mode = #tpu.pipeline_mode<synchronous>, transform_indices = @transform_5, window_bounds = array<i64: 1, 32>}, {pipeline_mode = #tpu.pipeline_mode<synchronous>, transform_indices = @transform_6, window_bounds = array<i64: 32, 64>}, {pipeline_mode = #tpu.pipeline_mode<synchronous>, transform_indices = @transform_7, window_bounds = array<i64: 1, 64>}, {pipeline_mode = #tpu.pipeline_mode<synchronous>, transform_indices = @transform_8, window_bounds = array<i64: 64, 32>}, {pipeline_mode = #tpu.pipeline_mode<synchronous>, transform_indices = @transform_9, window_bounds = array<i64: 1, 32>}, {pipeline_mode = #tpu.pipeline_mode<synchronous>, transform_indices = @transform_10, window_bounds = array<i64: 1, 32>}, {pipeline_mode = #tpu.pipeline_mode<synchronous>, transform_indices = @transform_11, window_bounds = array<i64: 1, 32>}, {pipeline_mode = #tpu.pipeline_mode<synchronous>, transform_indices = @transform_12, window_bounds = array<i64: 1, 32>}, {pipeline_mode = #tpu.pipeline_mode<synchronous>, transform_indices = @transform_13, window_bounds = array<i64: 1, 32>}, {pipeline_mode = #tpu.pipeline_mode<synchronous>, transform_indices = @transform_14, window_bounds = array<i64: 32, 128>}, {pipeline_mode = #tpu.pipeline_mode<synchronous>, transform_indices = @transform_15, window_bounds = array<i64: 1, 128>}, {transform_indices = @transform_16, window_bounds = array<i64: 16, 128>}]} {
    %c0 = arith.constant 0 : index
    %c0_0 = arith.constant 0 : index
    %c0_1 = arith.constant 0 : index
    %0 = vector.load %arg1[%c0, %c0_0, %c0_1] : memref<2x8x32xf32, #tpu.memory_space<vmem>>, vector<2x8x32xf32>
    %c0_2 = arith.constant 0 : index
    %c0_3 = arith.constant 0 : index
    %1 = vector.load %arg2[%c0_2, %c0_3] : memref<8x32xf32, #tpu.memory_space<vmem>>, vector<8x32xf32>
    %2 = vector.shape_cast %1 : vector<8x32xf32> to vector<1x8x32xf32>
    %3 = vector.broadcast %2 : vector<1x8x32xf32> to vector<2x8x32xf32>
    %4 = arith.addf %0, %3 : vector<2x8x32xf32>
    %5 = vector.shape_cast %4 : vector<2x8x32xf32> to vector<16x32xf32>
    %c0_4 = arith.constant 0 : index
    %c0_5 = arith.constant 0 : index
    %6 = vector.load %arg3[%c0_4, %c0_5] : memref<32x96xf32, #tpu.memory_space<vmem>>, vector<32x96xf32>
    %cst = arith.constant dense<0.000000e+00> : vector<16x96xf32>
    %7 = tpu.matmul %5, %6, %cst {dimension_numbers = #tpu.dot_dimension_numbers<[1], [0], [0], [1], [0, 0, 1, 1], [], []>} : vector<16x32xf32>, vector<32x96xf32>, vector<16x96xf32> -> vector<16x96xf32>
    %c0_6 = arith.constant 0 : index
    %c0_7 = arith.constant 0 : index
    %8 = vector.load %arg4[%c0_6, %c0_7] : memref<1x96xf32, #tpu.memory_space<vmem>>, vector<1x96xf32>
    %9 = vector.broadcast %8 : vector<1x96xf32> to vector<16x96xf32>
    %10 = arith.addf %7, %9 : vector<16x96xf32>
    %11 = vector.extract_strided_slice %10 {offsets = [0, 0], sizes = [16, 8], strides = [1, 1]} : vector<16x96xf32> to vector<16x8xf32>
    %12 = vector.shape_cast %11 : vector<16x8xf32> to vector<2x8x8xf32>
    %13 = vector.extract_strided_slice %10 {offsets = [0, 32], sizes = [16, 8], strides = [1, 1]} : vector<16x96xf32> to vector<16x8xf32>
    %14 = vector.shape_cast %13 : vector<16x8xf32> to vector<2x8x8xf32>
    %15 = vector.extract_strided_slice %10 {offsets = [0, 64], sizes = [16, 8], strides = [1, 1]} : vector<16x96xf32> to vector<16x8xf32>
    %16 = vector.shape_cast %15 : vector<16x8xf32> to vector<2x8x8xf32>
    "tpu.trace_start"() <{level = 10 : i32, message = "bqd,bkd->bqk"}> : () -> ()
    %cst_8 = arith.constant dense<0.000000e+00> : vector<2x8x8xf32>
    %17 = tpu.matmul %12, %14, %cst_8 {dimension_numbers = #tpu.dot_dimension_numbers<[2], [2], [1], [1], [0, 0, 0, 1, 1, 1], [0], [0]>} : vector<2x8x8xf32>, vector<2x8x8xf32>, vector<2x8x8xf32> -> vector<2x8x8xf32>
    "tpu.trace_stop"() : () -> ()
    %cst_9 = arith.constant 0.353553385 : f32
    %18 = vector.broadcast %cst_9 : f32 to vector<2x8x8xf32>
    %19 = arith.mulf %17, %18 : vector<2x8x8xf32>
    %cst_10 = arith.constant dense<0xFF800000> : vector<2x8xf32>
    %20 = vector.multi_reduction <maximumf>, %19, %cst_10 [2] : vector<2x8x8xf32> to vector<2x8xf32>
    %21 = vector.shape_cast %20 : vector<2x8xf32> to vector<2x8x1xf32>
    %22 = vector.broadcast %21 : vector<2x8x1xf32> to vector<2x8x8xf32>
    %23 = arith.subf %19, %22 : vector<2x8x8xf32>
    %24 = math.exp %23 : vector<2x8x8xf32>
    %cst_11 = arith.constant dense<0.000000e+00> : vector<2x8xf32>
    %25 = vector.multi_reduction <add>, %24, %cst_11 [2] : vector<2x8x8xf32> to vector<2x8xf32>
    %26 = vector.shape_cast %25 : vector<2x8xf32> to vector<2x8x1xf32>
    %27 = vector.broadcast %26 : vector<2x8x1xf32> to vector<2x8x8xf32>
    %28 = arith.divf %24, %27 : vector<2x8x8xf32>
    "tpu.trace_start"() <{level = 10 : i32, message = "bqk,bkd->bqd"}> : () -> ()
    %cst_12 = arith.constant dense<0.000000e+00> : vector<2x8x8xf32>
    %29 = tpu.matmul %28, %16, %cst_12 {dimension_numbers = #tpu.dot_dimension_numbers<[2], [1], [1], [2], [0, 0, 0, 1, 1, 2], [0], [0]>} : vector<2x8x8xf32>, vector<2x8x8xf32>, vector<2x8x8xf32> -> vector<2x8x8xf32>
    "tpu.trace_stop"() : () -> ()
    %30 = vector.shape_cast %29 : vector<2x8x8xf32> to vector<16x8xf32>
    %31 = vector.extract_strided_slice %10 {offsets = [0, 8], sizes = [16, 8], strides = [1, 1]} : vector<16x96xf32> to vector<16x8xf32>
    %32 = vector.shape_cast %31 : vector<16x8xf32> to vector<2x8x8xf32>
    %33 = vector.extract_strided_slice %10 {offsets = [0, 40], sizes = [16, 8], strides = [1, 1]} : vector<16x96xf32> to vector<16x8xf32>
    %34 = vector.shape_cast %33 : vector<16x8xf32> to vector<2x8x8xf32>
    %35 = vector.extract_strided_slice %10 {offsets = [0, 72], sizes = [16, 8], strides = [1, 1]} : vector<16x96xf32> to vector<16x8xf32>
    %36 = vector.shape_cast %35 : vector<16x8xf32> to vector<2x8x8xf32>
    "tpu.trace_start"() <{level = 10 : i32, message = "bqd,bkd->bqk"}> : () -> ()
    %cst_13 = arith.constant dense<0.000000e+00> : vector<2x8x8xf32>
    %37 = tpu.matmul %32, %34, %cst_13 {dimension_numbers = #tpu.dot_dimension_numbers<[2], [2], [1], [1], [0, 0, 0, 1, 1, 1], [0], [0]>} : vector<2x8x8xf32>, vector<2x8x8xf32>, vector<2x8x8xf32> -> vector<2x8x8xf32>
    "tpu.trace_stop"() : () -> ()
    %cst_14 = arith.constant 0.353553385 : f32
    %38 = vector.broadcast %cst_14 : f32 to vector<2x8x8xf32>
    %39 = arith.mulf %37, %38 : vector<2x8x8xf32>
    %cst_15 = arith.constant dense<0xFF800000> : vector<2x8xf32>
    %40 = vector.multi_reduction <maximumf>, %39, %cst_15 [2] : vector<2x8x8xf32> to vector<2x8xf32>
    %41 = vector.shape_cast %40 : vector<2x8xf32> to vector<2x8x1xf32>
    %42 = vector.broadcast %41 : vector<2x8x1xf32> to vector<2x8x8xf32>
    %43 = arith.subf %39, %42 : vector<2x8x8xf32>
    %44 = math.exp %43 : vector<2x8x8xf32>
    %cst_16 = arith.constant dense<0.000000e+00> : vector<2x8xf32>
    %45 = vector.multi_reduction <add>, %44, %cst_16 [2] : vector<2x8x8xf32> to vector<2x8xf32>
    %46 = vector.shape_cast %45 : vector<2x8xf32> to vector<2x8x1xf32>
    %47 = vector.broadcast %46 : vector<2x8x1xf32> to vector<2x8x8xf32>
    %48 = arith.divf %44, %47 : vector<2x8x8xf32>
    "tpu.trace_start"() <{level = 10 : i32, message = "bqk,bkd->bqd"}> : () -> ()
    %cst_17 = arith.constant dense<0.000000e+00> : vector<2x8x8xf32>
    %49 = tpu.matmul %48, %36, %cst_17 {dimension_numbers = #tpu.dot_dimension_numbers<[2], [1], [1], [2], [0, 0, 0, 1, 1, 2], [0], [0]>} : vector<2x8x8xf32>, vector<2x8x8xf32>, vector<2x8x8xf32> -> vector<2x8x8xf32>
    "tpu.trace_stop"() : () -> ()
    %50 = vector.shape_cast %49 : vector<2x8x8xf32> to vector<16x8xf32>
    %51 = vector.extract_strided_slice %10 {offsets = [0, 16], sizes = [16, 8], strides = [1, 1]} : vector<16x96xf32> to vector<16x8xf32>
    %52 = vector.shape_cast %51 : vector<16x8xf32> to vector<2x8x8xf32>
    %53 = vector.extract_strided_slice %10 {offsets = [0, 48], sizes = [16, 8], strides = [1, 1]} : vector<16x96xf32> to vector<16x8xf32>
    %54 = vector.shape_cast %53 : vector<16x8xf32> to vector<2x8x8xf32>
    %55 = vector.extract_strided_slice %10 {offsets = [0, 80], sizes = [16, 8], strides = [1, 1]} : vector<16x96xf32> to vector<16x8xf32>
    %56 = vector.shape_cast %55 : vector<16x8xf32> to vector<2x8x8xf32>
    "tpu.trace_start"() <{level = 10 : i32, message = "bqd,bkd->bqk"}> : () -> ()
    %cst_18 = arith.constant dense<0.000000e+00> : vector<2x8x8xf32>
    %57 = tpu.matmul %52, %54, %cst_18 {dimension_numbers = #tpu.dot_dimension_numbers<[2], [2], [1], [1], [0, 0, 0, 1, 1, 1], [0], [0]>} : vector<2x8x8xf32>, vector<2x8x8xf32>, vector<2x8x8xf32> -> vector<2x8x8xf32>
    "tpu.trace_stop"() : () -> ()
    %cst_19 = arith.constant 0.353553385 : f32
    %58 = vector.broadcast %cst_19 : f32 to vector<2x8x8xf32>
    %59 = arith.mulf %57, %58 : vector<2x8x8xf32>
    %cst_20 = arith.constant dense<0xFF800000> : vector<2x8xf32>
    %60 = vector.multi_reduction <maximumf>, %59, %cst_20 [2] : vector<2x8x8xf32> to vector<2x8xf32>
    %61 = vector.shape_cast %60 : vector<2x8xf32> to vector<2x8x1xf32>
    %62 = vector.broadcast %61 : vector<2x8x1xf32> to vector<2x8x8xf32>
    %63 = arith.subf %59, %62 : vector<2x8x8xf32>
    %64 = math.exp %63 : vector<2x8x8xf32>
    %cst_21 = arith.constant dense<0.000000e+00> : vector<2x8xf32>
    %65 = vector.multi_reduction <add>, %64, %cst_21 [2] : vector<2x8x8xf32> to vector<2x8xf32>
    %66 = vector.shape_cast %65 : vector<2x8xf32> to vector<2x8x1xf32>
    %67 = vector.broadcast %66 : vector<2x8x1xf32> to vector<2x8x8xf32>
    %68 = arith.divf %64, %67 : vector<2x8x8xf32>
    "tpu.trace_start"() <{level = 10 : i32, message = "bqk,bkd->bqd"}> : () -> ()
    %cst_22 = arith.constant dense<0.000000e+00> : vector<2x8x8xf32>
    %69 = tpu.matmul %68, %56, %cst_22 {dimension_numbers = #tpu.dot_dimension_numbers<[2], [1], [1], [2], [0, 0, 0, 1, 1, 2], [0], [0]>} : vector<2x8x8xf32>, vector<2x8x8xf32>, vector<2x8x8xf32> -> vector<2x8x8xf32>
    "tpu.trace_stop"() : () -> ()
    %70 = vector.shape_cast %69 : vector<2x8x8xf32> to vector<16x8xf32>
    %71 = vector.extract_strided_slice %10 {offsets = [0, 24], sizes = [16, 8], strides = [1, 1]} : vector<16x96xf32> to vector<16x8xf32>
    %72 = vector.shape_cast %71 : vector<16x8xf32> to vector<2x8x8xf32>
    %73 = vector.extract_strided_slice %10 {offsets = [0, 56], sizes = [16, 8], strides = [1, 1]} : vector<16x96xf32> to vector<16x8xf32>
    %74 = vector.shape_cast %73 : vector<16x8xf32> to vector<2x8x8xf32>
    %75 = vector.extract_strided_slice %10 {offsets = [0, 88], sizes = [16, 8], strides = [1, 1]} : vector<16x96xf32> to vector<16x8xf32>
    %76 = vector.shape_cast %75 : vector<16x8xf32> to vector<2x8x8xf32>
    "tpu.trace_start"() <{level = 10 : i32, message = "bqd,bkd->bqk"}> : () -> ()
    %cst_23 = arith.constant dense<0.000000e+00> : vector<2x8x8xf32>
    %77 = tpu.matmul %72, %74, %cst_23 {dimension_numbers = #tpu.dot_dimension_numbers<[2], [2], [1], [1], [0, 0, 0, 1, 1, 1], [0], [0]>} : vector<2x8x8xf32>, vector<2x8x8xf32>, vector<2x8x8xf32> -> vector<2x8x8xf32>
    "tpu.trace_stop"() : () -> ()
    %cst_24 = arith.constant 0.353553385 : f32
    %78 = vector.broadcast %cst_24 : f32 to vector<2x8x8xf32>
    %79 = arith.mulf %77, %78 : vector<2x8x8xf32>
    %cst_25 = arith.constant dense<0xFF800000> : vector<2x8xf32>
    %80 = vector.multi_reduction <maximumf>, %79, %cst_25 [2] : vector<2x8x8xf32> to vector<2x8xf32>
    %81 = vector.shape_cast %80 : vector<2x8xf32> to vector<2x8x1xf32>
    %82 = vector.broadcast %81 : vector<2x8x1xf32> to vector<2x8x8xf32>
    %83 = arith.subf %79, %82 : vector<2x8x8xf32>
    %84 = math.exp %83 : vector<2x8x8xf32>
    %cst_26 = arith.constant dense<0.000000e+00> : vector<2x8xf32>
    %85 = vector.multi_reduction <add>, %84, %cst_26 [2] : vector<2x8x8xf32> to vector<2x8xf32>
    %86 = vector.shape_cast %85 : vector<2x8xf32> to vector<2x8x1xf32>
    %87 = vector.broadcast %86 : vector<2x8x1xf32> to vector<2x8x8xf32>
    %88 = arith.divf %84, %87 : vector<2x8x8xf32>
    "tpu.trace_start"() <{level = 10 : i32, message = "bqk,bkd->bqd"}> : () -> ()
    %cst_27 = arith.constant dense<0.000000e+00> : vector<2x8x8xf32>
    %89 = tpu.matmul %88, %76, %cst_27 {dimension_numbers = #tpu.dot_dimension_numbers<[2], [1], [1], [2], [0, 0, 0, 1, 1, 2], [0], [0]>} : vector<2x8x8xf32>, vector<2x8x8xf32>, vector<2x8x8xf32> -> vector<2x8x8xf32>
    "tpu.trace_stop"() : () -> ()
    %90 = vector.shape_cast %89 : vector<2x8x8xf32> to vector<16x8xf32>
    %91 = tpu.concatenate %30, %50, %70, %90 in 1 : vector<16x8xf32>, vector<16x8xf32>, vector<16x8xf32>, vector<16x8xf32> -> vector<16x32xf32>
    %c0_28 = arith.constant 0 : index
    %c0_29 = arith.constant 0 : index
    %92 = vector.load %arg5[%c0_28, %c0_29] : memref<32x32xf32, #tpu.memory_space<vmem>>, vector<32x32xf32>
    %cst_30 = arith.constant dense<0.000000e+00> : vector<16x32xf32>
    %93 = tpu.matmul %91, %92, %cst_30 {dimension_numbers = #tpu.dot_dimension_numbers<[1], [0], [0], [1], [0, 0, 1, 1], [], []>} : vector<16x32xf32>, vector<32x32xf32>, vector<16x32xf32> -> vector<16x32xf32>
    %c0_31 = arith.constant 0 : index
    %c0_32 = arith.constant 0 : index
    %94 = vector.load %arg6[%c0_31, %c0_32] : memref<1x32xf32, #tpu.memory_space<vmem>>, vector<1x32xf32>
    %95 = vector.broadcast %94 : vector<1x32xf32> to vector<16x32xf32>
    %96 = arith.addf %93, %95 : vector<16x32xf32>
    %97 = arith.addf %5, %96 : vector<16x32xf32>
    %c0_33 = arith.constant 0 : index
    %c0_34 = arith.constant 0 : index
    %98 = vector.load %arg11[%c0_33, %c0_34] : memref<1x32xf32, #tpu.memory_space<vmem>>, vector<1x32xf32>
    %c0_35 = arith.constant 0 : index
    %c0_36 = arith.constant 0 : index
    %99 = vector.load %arg12[%c0_35, %c0_36] : memref<1x32xf32, #tpu.memory_space<vmem>>, vector<1x32xf32>
    %cst_37 = arith.constant dense<0.000000e+00> : vector<16xf32>
    %100 = vector.multi_reduction <add>, %97, %cst_37 [1] : vector<16x32xf32> to vector<16xf32>
    %101 = vector.shape_cast %100 : vector<16xf32> to vector<16x1xf32>
    %cst_38 = arith.constant 3.200000e+01 : f32
    %102 = vector.broadcast %cst_38 : f32 to vector<16x1xf32>
    %103 = arith.divf %101, %102 : vector<16x1xf32>
    %104 = vector.broadcast %103 : vector<16x1xf32> to vector<16x32xf32>
    %105 = arith.subf %97, %104 : vector<16x32xf32>
    %106 = arith.mulf %105, %105 : vector<16x32xf32>
    %cst_39 = arith.constant dense<0.000000e+00> : vector<16xf32>
    %107 = vector.multi_reduction <add>, %106, %cst_39 [1] : vector<16x32xf32> to vector<16xf32>
    %108 = vector.shape_cast %107 : vector<16xf32> to vector<16x1xf32>
    %cst_40 = arith.constant 3.200000e+01 : f32
    %109 = vector.broadcast %cst_40 : f32 to vector<16x1xf32>
    %110 = arith.divf %108, %109 : vector<16x1xf32>
    %111 = vector.broadcast %103 : vector<16x1xf32> to vector<16x32xf32>
    %112 = arith.subf %97, %111 : vector<16x32xf32>
    %cst_41 = arith.constant 9.99999974E-6 : f32
    %113 = vector.broadcast %cst_41 : f32 to vector<16x1xf32>
    %114 = arith.addf %110, %113 : vector<16x1xf32>
    %115 = math.rsqrt %114 : vector<16x1xf32>
    %116 = vector.broadcast %115 : vector<16x1xf32> to vector<16x32xf32>
    %117 = arith.mulf %112, %116 : vector<16x32xf32>
    %118 = vector.broadcast %98 : vector<1x32xf32> to vector<16x32xf32>
    %119 = arith.mulf %117, %118 : vector<16x32xf32>
    %120 = vector.broadcast %99 : vector<1x32xf32> to vector<16x32xf32>
    %121 = arith.addf %119, %120 : vector<16x32xf32>
    %c0_42 = arith.constant 0 : index
    %c0_43 = arith.constant 0 : index
    %122 = vector.load %arg7[%c0_42, %c0_43] : memref<32x64xf32, #tpu.memory_space<vmem>>, vector<32x64xf32>
    %cst_44 = arith.constant dense<0.000000e+00> : vector<16x64xf32>
    %123 = tpu.matmul %121, %122, %cst_44 {dimension_numbers = #tpu.dot_dimension_numbers<[1], [0], [0], [1], [0, 0, 1, 1], [], []>} : vector<16x32xf32>, vector<32x64xf32>, vector<16x64xf32> -> vector<16x64xf32>
    %c0_45 = arith.constant 0 : index
    %c0_46 = arith.constant 0 : index
    %124 = vector.load %arg8[%c0_45, %c0_46] : memref<1x64xf32, #tpu.memory_space<vmem>>, vector<1x64xf32>
    %125 = vector.broadcast %124 : vector<1x64xf32> to vector<16x64xf32>
    %126 = arith.addf %123, %125 : vector<16x64xf32>
    %cst_47 = arith.constant 0.000000e+00 : f32
    %127 = vector.broadcast %cst_47 : f32 to vector<16x64xf32>
    %128 = arith.maximumf %126, %127 : vector<16x64xf32>
    %c0_48 = arith.constant 0 : index
    %c0_49 = arith.constant 0 : index
    %129 = vector.load %arg9[%c0_48, %c0_49] : memref<64x32xf32, #tpu.memory_space<vmem>>, vector<64x32xf32>
    %cst_50 = arith.constant dense<0.000000e+00> : vector<16x32xf32>
    %130 = tpu.matmul %128, %129, %cst_50 {dimension_numbers = #tpu.dot_dimension_numbers<[1], [0], [0], [1], [0, 0, 1, 1], [], []>} : vector<16x64xf32>, vector<64x32xf32>, vector<16x32xf32> -> vector<16x32xf32>
    %c0_51 = arith.constant 0 : index
    %c0_52 = arith.constant 0 : index
    %131 = vector.load %arg10[%c0_51, %c0_52] : memref<1x32xf32, #tpu.memory_space<vmem>>, vector<1x32xf32>
    %132 = vector.broadcast %131 : vector<1x32xf32> to vector<16x32xf32>
    %133 = arith.addf %130, %132 : vector<16x32xf32>
    %134 = arith.addf %121, %133 : vector<16x32xf32>
    %c0_53 = arith.constant 0 : index
    %c0_54 = arith.constant 0 : index
    %135 = vector.load %arg13[%c0_53, %c0_54] : memref<1x32xf32, #tpu.memory_space<vmem>>, vector<1x32xf32>
    %c0_55 = arith.constant 0 : index
    %c0_56 = arith.constant 0 : index
    %136 = vector.load %arg14[%c0_55, %c0_56] : memref<1x32xf32, #tpu.memory_space<vmem>>, vector<1x32xf32>
    %cst_57 = arith.constant dense<0.000000e+00> : vector<16xf32>
    %137 = vector.multi_reduction <add>, %134, %cst_57 [1] : vector<16x32xf32> to vector<16xf32>
    %138 = vector.shape_cast %137 : vector<16xf32> to vector<16x1xf32>
    %cst_58 = arith.constant 3.200000e+01 : f32
    %139 = vector.broadcast %cst_58 : f32 to vector<16x1xf32>
    %140 = arith.divf %138, %139 : vector<16x1xf32>
    %141 = vector.broadcast %140 : vector<16x1xf32> to vector<16x32xf32>
    %142 = arith.subf %134, %141 : vector<16x32xf32>
    %143 = arith.mulf %142, %142 : vector<16x32xf32>
    %cst_59 = arith.constant dense<0.000000e+00> : vector<16xf32>
    %144 = vector.multi_reduction <add>, %143, %cst_59 [1] : vector<16x32xf32> to vector<16xf32>
    %145 = vector.shape_cast %144 : vector<16xf32> to vector<16x1xf32>
    %cst_60 = arith.constant 3.200000e+01 : f32
    %146 = vector.broadcast %cst_60 : f32 to vector<16x1xf32>
    %147 = arith.divf %145, %146 : vector<16x1xf32>
    %148 = vector.broadcast %140 : vector<16x1xf32> to vector<16x32xf32>
    %149 = arith.subf %134, %148 : vector<16x32xf32>
    %cst_61 = arith.constant 9.99999974E-6 : f32
    %150 = vector.broadcast %cst_61 : f32 to vector<16x1xf32>
    %151 = arith.addf %147, %150 : vector<16x1xf32>
    %152 = math.rsqrt %151 : vector<16x1xf32>
    %153 = vector.broadcast %152 : vector<16x1xf32> to vector<16x32xf32>
    %154 = arith.mulf %149, %153 : vector<16x32xf32>
    %155 = vector.broadcast %135 : vector<1x32xf32> to vector<16x32xf32>
    %156 = arith.mulf %154, %155 : vector<16x32xf32>
    %157 = vector.broadcast %136 : vector<1x32xf32> to vector<16x32xf32>
    %158 = arith.addf %156, %157 : vector<16x32xf32>
    %c0_62 = arith.constant 0 : index
    %c0_63 = arith.constant 0 : index
    %159 = vector.load %arg15[%c0_62, %c0_63] : memref<32x128xf32, #tpu.memory_space<vmem>>, vector<32x128xf32>
    %cst_64 = arith.constant dense<0.000000e+00> : vector<16x128xf32>
    %160 = tpu.matmul %158, %159, %cst_64 {dimension_numbers = #tpu.dot_dimension_numbers<[1], [0], [0], [1], [0, 0, 1, 1], [], []>} : vector<16x32xf32>, vector<32x128xf32>, vector<16x128xf32> -> vector<16x128xf32>
    %c0_65 = arith.constant 0 : index
    %c0_66 = arith.constant 0 : index
    %161 = vector.load %arg16[%c0_65, %c0_66] : memref<1x128xf32, #tpu.memory_space<vmem>>, vector<1x128xf32>
    %162 = vector.broadcast %161 : vector<1x128xf32> to vector<16x128xf32>
    %163 = arith.addf %160, %162 : vector<16x128xf32>
    %c0_67 = arith.constant 0 : index
    %c0_68 = arith.constant 0 : index
    %164 = vector.load %arg17[%c0_67, %c0_68] : memref<16x128xf32, #tpu.memory_space<vmem>>, vector<16x128xf32>
    tpu.vector_store %arg17[%c0_67, %c0_68], %163 {strides = array<i32>} : memref<16x128xf32, #tpu.memory_space<vmem>>, vector<16x128xf32>,
    return
  }
  func.func @transform_0(%arg0: i32) -> (i32, i32, i32) {
    %c0_i32 = arith.constant 0 : i32
    %c0_i32_0 = arith.constant 0 : i32
    %c0_i32_1 = arith.constant 0 : i32
    return %arg0, %c0_i32, %c0_i32_0 : i32, i32, i32
  }
  func.func @transform_1(%arg0: i32) -> (i32, i32) {
    %c0_i32 = arith.constant 0 : i32
    %c0_i32_0 = arith.constant 0 : i32
    %c0_i32_1 = arith.constant 0 : i32
    return %c0_i32, %c0_i32_0 : i32, i32
  }
  func.func @transform_2(%arg0: i32) -> (i32, i32) {
    %c0_i32 = arith.constant 0 : i32
    %c0_i32_0 = arith.constant 0 : i32
    %c0_i32_1 = arith.constant 0 : i32
    return %c0_i32, %c0_i32_0 : i32, i32
  }
  func.func @transform_3(%arg0: i32) -> (i32, i32) {
    %c0_i32 = arith.constant 0 : i32
    %c0_i32_0 = arith.constant 0 : i32
    %c0_i32_1 = arith.constant 0 : i32
    return %c0_i32, %c0_i32_0 : i32, i32
  }
  func.func @transform_4(%arg0: i32) -> (i32, i32) {
    %c0_i32 = arith.constant 0 : i32
    %c0_i32_0 = arith.constant 0 : i32
    %c0_i32_1 = arith.constant 0 : i32
    return %c0_i32, %c0_i32_0 : i32, i32
  }
  func.func @transform_5(%arg0: i32) -> (i32, i32) {
    %c0_i32 = arith.constant 0 : i32
    %c0_i32_0 = arith.constant 0 : i32
    %c0_i32_1 = arith.constant 0 : i32
    return %c0_i32, %c0_i32_0 : i32, i32
  }
  func.func @transform_6(%arg0: i32) -> (i32, i32) {
    %c0_i32 = arith.constant 0 : i32
    %c0_i32_0 = arith.constant 0 : i32
    %c0_i32_1 = arith.constant 0 : i32
    return %c0_i32, %c0_i32_0 : i32, i32
  }
  func.func @transform_7(%arg0: i32) -> (i32, i32) {
    %c0_i32 = arith.constant 0 : i32
    %c0_i32_0 = arith.constant 0 : i32
    %c0_i32_1 = arith.constant 0 : i32
    return %c0_i32, %c0_i32_0 : i32, i32
  }
  func.func @transform_8(%arg0: i32) -> (i32, i32) {
    %c0_i32 = arith.constant 0 : i32
    %c0_i32_0 = arith.constant 0 : i32
    %c0_i32_1 = arith.constant 0 : i32
    return %c0_i32, %c0_i32_0 : i32, i32
  }
  func.func @transform_9(%arg0: i32) -> (i32, i32) {
    %c0_i32 = arith.constant 0 : i32
    %c0_i32_0 = arith.constant 0 : i32
    %c0_i32_1 = arith.constant 0 : i32
    return %c0_i32, %c0_i32_0 : i32, i32
  }
  func.func @transform_10(%arg0: i32) -> (i32, i32) {
    %c0_i32 = arith.constant 0 : i32
    %c0_i32_0 = arith.constant 0 : i32
    %c0_i32_1 = arith.constant 0 : i32
    return %c0_i32, %c0_i32_0 : i32, i32
  }
  func.func @transform_11(%arg0: i32) -> (i32, i32) {
    %c0_i32 = arith.constant 0 : i32
    %c0_i32_0 = arith.constant 0 : i32
    %c0_i32_1 = arith.constant 0 : i32
    return %c0_i32, %c0_i32_0 : i32, i32
  }
  func.func @transform_12(%arg0: i32) -> (i32, i32) {
    %c0_i32 = arith.constant 0 : i32
    %c0_i32_0 = arith.constant 0 : i32
    %c0_i32_1 = arith.constant 0 : i32
    return %c0_i32, %c0_i32_0 : i32, i32
  }
  func.func @transform_13(%arg0: i32) -> (i32, i32) {
    %c0_i32 = arith.constant 0 : i32
    %c0_i32_0 = arith.constant 0 : i32
    %c0_i32_1 = arith.constant 0 : i32
    return %c0_i32, %c0_i32_0 : i32, i32
  }
  func.func @transform_14(%arg0: i32) -> (i32, i32) {
    %c0_i32 = arith.constant 0 : i32
    %c0_i32_0 = arith.constant 0 : i32
    %c0_i32_1 = arith.constant 0 : i32
    return %c0_i32, %c0_i32_0 : i32, i32
  }
  func.func @transform_15(%arg0: i32) -> (i32, i32) {
    %c0_i32 = arith.constant 0 : i32
    %c0_i32_0 = arith.constant 0 : i32
    %c0_i32_1 = arith.constant 0 : i32
    return %c0_i32, %c0_i32_0 : i32, i32
  }
  func.func @transform_16(%arg0: i32) -> (i32, i32) {
    %c0_i32 = arith.constant 0 : i32
    %c0_i32_0 = arith.constant 0 : i32
    return %arg0, %c0_i32 : i32, i32
  }
}

</mosaic_0001>

<llo_original>
// kernel: tpu_custom_call.1
$region0: #{tpu_custom_call.1}
  #allocation0 [shape = 'u32[]', space=smem, size = 0x4, offset = 0x4, fixed_abs, tag = 'smem constant byte address 0x4 - core index']
  #allocation1 [shape = 'u32[144,128]{1,0:T(1,128)}', space=vmem, size = 0x12000, scoped, tag = 'internal scratch']
  %s0 = inlined_call_operand.hbm [shape: f32[2,8,32], index: 0, kind: input, shape index: {}]
  %s1 = inlined_call_operand.hbm [shape: f32[8,32], index: 1, kind: input, shape index: {}]
  %s2 = inlined_call_operand.vmem [shape: f32[32,96], index: 2, kind: input, shape index: {}]
  %s3 = inlined_call_operand.vmem [shape: f32[1,96], index: 3, kind: input, shape index: {}]
  %s4 = inlined_call_operand.vmem [shape: f32[32,32], index: 4, kind: input, shape index: {}]
  %s5 = inlined_call_operand.vmem [shape: f32[1,32], index: 5, kind: input, shape index: {}]
  %s6 = inlined_call_operand.vmem [shape: f32[32,64], index: 6, kind: input, shape index: {}]
  %s7 = inlined_call_operand.hbm [shape: f32[1,64], index: 7, kind: input, shape index: {}]
  %s8 = inlined_call_operand.vmem [shape: f32[64,32], index: 8, kind: input, shape index: {}]
  %s9 = inlined_call_operand.hbm [shape: f32[1,32], index: 9, kind: input, shape index: {}]
  %s10 = inlined_call_operand.vmem [shape: f32[1,32], index: 10, kind: input, shape index: {}]
  %s11 = inlined_call_operand.vmem [shape: f32[1,32], index: 11, kind: input, shape index: {}]
  %s12 = inlined_call_operand.vmem [shape: f32[1,32], index: 12, kind: input, shape index: {}]
  %s13 = inlined_call_operand.vmem [shape: f32[1,32], index: 13, kind: input, shape index: {}]
  %s14 = inlined_call_operand.vmem [shape: f32[32,128], index: 14, kind: input, shape index: {}]
  %s15 = inlined_call_operand.vmem [shape: f32[1,128], index: 15, kind: input, shape index: {}]
  %s16 = inlined_call_operand.hbm [shape: f32[16,128], index: 16, kind: output, shape index: {}]
  %s17 = sld [smem:[#allocation0]]
  $region90: #{tpu_custom_call.1} parent=0
    _
  %s19 = ssub.s32 1, %s17
  %s20 = scalar_select 0, %s19, %s17
  $region1: #{tpu_custom_call.1} parent=0
    #allocation2 [shape = 'u8[8192]{0}', space=vmem, size = 0x2000, scoped, tag = 'input window, operand 0, single buffered']
    #allocation3 [shape = 's32[1]{0}', space=sflag, size = 0x4, scoped, tag = 'scoped memory for tpu_custom_call.1']
    #allocation4 [shape = 's32[1]{0}', space=sflag, size = 0x4, scoped, tag = 'scoped memory for tpu_custom_call.1']
    #allocation5 [shape = 'u8[4096]{0}', space=vmem, size = 0x1000, scoped, tag = 'input window, operand 1, single buffered']
    #allocation6 [shape = 's32[1]{0}', space=sflag, size = 0x4, scoped, tag = 'scoped memory for tpu_custom_call.1']
    #allocation7 [shape = 'u8[512]{0}', space=vmem, size = 0x400, scoped, tag = 'input window, operand 7, single buffered']
    #allocation8 [shape = 'u8[512]{0}', space=vmem, size = 0x400, scoped, tag = 'input window, operand 9, single buffered']
    #allocation9 [shape = 's32[1]{0}', space=sflag, size = 0x4, scoped, tag = 'scoped memory for tpu_custom_call.1']
    #allocation10 [shape = 'u8[8192]{0}', space=vmem, size = 0x2000, scoped, tag = 'output window, operand 0, single buffered']
    %21 = vsyncpa [#allocation3], 0
    %22 = vsyncpa [#allocation6], 0
    %23 = vsyncpa [#allocation9], 0
    %24 = vsyncpa [#allocation4], 0
    // Predicated region
    $region2: #{tpu_custom_call.1} parent=1 // pred_check
      _
    $region3: #{tpu_custom_call.1} parent=1 // pred_check_branch
      %26 = sbr.rel (0) target = $region5
    $region4: #{tpu_custom_call.1} parent=1 // pred_region
      %s28 = ssub.s32 256, 256
      %29 = vsyncadd [#allocation3], %s28
      %s30 = sshll.u32 [#allocation2], 4
      %s31 = int_to_ptr.vmem [resolvable:$true] %s30
      %36 = dma.hbm_to_vmem [thread:$0]  %s0, 256, %s31, [#allocation3], 128, 128, 8
    $region5: #{tpu_custom_call.1} parent=1 // pred_fallthru
      _
    // Predicated region
    $region6: #{tpu_custom_call.1} parent=1 // pred_check
      _
    $region7: #{tpu_custom_call.1} parent=1 // pred_check_branch
      %38 = sbr.rel (0) target = $region9
    $region8: #{tpu_custom_call.1} parent=1 // pred_region
      %s40 = ssub.s32 128, 128
      %41 = vsyncadd [#allocation6], %s40
      %s43 = sshll.u32 [#allocation5], 4
      %s44 = int_to_ptr.vmem [resolvable:$true] %s43
      %46 = dma.hbm_to_vmem [thread:$0]  %s1, 128, %s44, [#allocation6]
    $region9: #{tpu_custom_call.1} parent=1 // pred_fallthru
      _
    // Predicated region
    $region10: #{tpu_custom_call.1} parent=1 // pred_check
      _
    $region11: #{tpu_custom_call.1} parent=1 // pred_check_branch
      %48 = sbr.rel (0) target = $region13
    $region12: #{tpu_custom_call.1} parent=1 // pred_region
      _
    $region13: #{tpu_custom_call.1} parent=1 // pred_fallthru
      _
    // Predicated region
    $region14: #{tpu_custom_call.1} parent=1 // pred_check
      _
    $region15: #{tpu_custom_call.1} parent=1 // pred_check_branch
      %50 = sbr.rel (0) target = $region17
    $region16: #{tpu_custom_call.1} parent=1 // pred_region
      _
    $region17: #{tpu_custom_call.1} parent=1 // pred_fallthru
      _
    // Predicated region
    $region18: #{tpu_custom_call.1} parent=1 // pred_check
      _
    $region19: #{tpu_custom_call.1} parent=1 // pred_check_branch
      %52 = sbr.rel (0) target = $region21
    $region20: #{tpu_custom_call.1} parent=1 // pred_region
      _
    $region21: #{tpu_custom_call.1} parent=1 // pred_fallthru
      _
    // Predicated region
    $region22: #{tpu_custom_call.1} parent=1 // pred_check
      _
    $region23: #{tpu_custom_call.1} parent=1 // pred_check_branch
      %54 = sbr.rel (0) target = $region25
    $region24: #{tpu_custom_call.1} parent=1 // pred_region
      _
    $region25: #{tpu_custom_call.1} parent=1 // pred_fallthru
      _
    // Predicated region
    $region26: #{tpu_custom_call.1} parent=1 // pred_check
      _
    $region27: #{tpu_custom_call.1} parent=1 // pred_check_branch
      %56 = sbr.rel (0) target = $region29
    $region28: #{tpu_custom_call.1} parent=1 // pred_region
      _
    $region29: #{tpu_custom_call.1} parent=1 // pred_fallthru
      _
    // Predicated region
    $region30: #{tpu_custom_call.1} parent=1 // pred_check
      _
    $region31: #{tpu_custom_call.1} parent=1 // pred_check_branch
      %58 = sbr.rel (0) target = $region33
    $region32: #{tpu_custom_call.1} parent=1 // pred_region
      %s60 = ssub.s32 16, 16
      %61 = vsyncadd [#allocation6], %s60
      %s63 = sshll.u32 [#allocation7], 4
      %s64 = int_to_ptr.vmem [resolvable:$true] %s63
      %66 = dma.hbm_to_vmem [thread:$0]  %s7, 16, %s64, [#allocation6]
    $region33: #{tpu_custom_call.1} parent=1 // pred_fallthru
      _
    // Predicated region
    $region34: #{tpu_custom_call.1} parent=1 // pred_check
      _
    $region35: #{tpu_custom_call.1} parent=1 // pred_check_branch
      %68 = sbr.rel (0) target = $region37
    $region36: #{tpu_custom_call.1} parent=1 // pred_region
      _
    $region37: #{tpu_custom_call.1} parent=1 // pred_fallthru
      _
    // Predicated region
    $region38: #{tpu_custom_call.1} parent=1 // pred_check
      _
    $region39: #{tpu_custom_call.1} parent=1 // pred_check_branch
      %70 = sbr.rel (0) target = $region41
    $region40: #{tpu_custom_call.1} parent=1 // pred_region
      %s72 = ssub.s32 16, 16
      %73 = vsyncadd [#allocation9], %s72
      %s75 = sshll.u32 [#allocation8], 4
      %s76 = int_to_ptr.vmem [resolvable:$true] %s75
      %78 = dma.hbm_to_vmem [thread:$0]  %s9, 16, %s76, [#allocation9]
    $region41: #{tpu_custom_call.1} parent=1 // pred_fallthru
      _
    // Predicated region
    $region42: #{tpu_custom_call.1} parent=1 // pred_check
      _
    $region43: #{tpu_custom_call.1} parent=1 // pred_check_branch
      %80 = sbr.rel (0) target = $region45
    $region44: #{tpu_custom_call.1} parent=1 // pred_region
      _
    $region45: #{tpu_custom_call.1} parent=1 // pred_fallthru
      _
    // Predicated region
    $region46: #{tpu_custom_call.1} parent=1 // pred_check
      _
    $region47: #{tpu_custom_call.1} parent=1 // pred_check_branch
      %82 = sbr.rel (0) target = $region49
    $region48: #{tpu_custom_call.1} parent=1 // pred_region
      _
    $region49: #{tpu_custom_call.1} parent=1 // pred_fallthru
      _
    // Predicated region
    $region50: #{tpu_custom_call.1} parent=1 // pred_check
      _
    $region51: #{tpu_custom_call.1} parent=1 // pred_check_branch
      %84 = sbr.rel (0) target = $region53
    $region52: #{tpu_custom_call.1} parent=1 // pred_region
      _
    $region53: #{tpu_custom_call.1} parent=1 // pred_fallthru
      _
    // Predicated region
    $region54: #{tpu_custom_call.1} parent=1 // pred_check
      _
    $region55: #{tpu_custom_call.1} parent=1 // pred_check_branch
      %86 = sbr.rel (0) target = $region57
    $region56: #{tpu_custom_call.1} parent=1 // pred_region
      _
    $region57: #{tpu_custom_call.1} parent=1 // pred_fallthru
      _
    // Predicated region
    $region58: #{tpu_custom_call.1} parent=1 // pred_check
      _
    $region59: #{tpu_custom_call.1} parent=1 // pred_check_branch
      %88 = sbr.rel (0) target = $region61
    $region60: #{tpu_custom_call.1} parent=1 // pred_region
      _
    $region61: #{tpu_custom_call.1} parent=1 // pred_fallthru
      _
    // Predicated region
    $region62: #{tpu_custom_call.1} parent=1 // pred_check
      _
    $region63: #{tpu_custom_call.1} parent=1 // pred_check_branch
      %90 = sbr.rel (0) target = $region65
    $region64: #{tpu_custom_call.1} parent=1 // pred_region
      _
    $region65: #{tpu_custom_call.1} parent=1 // pred_fallthru
      _
    // Predicated region
    $region66: #{tpu_custom_call.1} parent=1 // pred_check
      _
    $region67: #{tpu_custom_call.1} parent=1 // pred_check_branch
      %92 = sbr.rel (0) target = $region69
    $region68: #{tpu_custom_call.1} parent=1 // pred_region
      %93 = dma.done [#allocation3], 256
    $region69: #{tpu_custom_call.1} parent=1 // pred_fallthru
      _
    // Predicated region
    $region70: #{tpu_custom_call.1} parent=1 // pred_check
      _
    $region71: #{tpu_custom_call.1} parent=1 // pred_check_branch
      %95 = sbr.rel (0) target = $region73
    $region72: #{tpu_custom_call.1} parent=1 // pred_region
      %96 = dma.done [#allocation6], 128
    $region73: #{tpu_custom_call.1} parent=1 // pred_fallthru
      _
    // Predicated region
    $region74: #{tpu_custom_call.1} parent=1 // pred_check
      _
    $region75: #{tpu_custom_call.1} parent=1 // pred_check_branch
      %98 = sbr.rel (0) target = $region77
    $region76: #{tpu_custom_call.1} parent=1 // pred_region
      %99 = dma.done [#allocation6], 16
    $region77: #{tpu_custom_call.1} parent=1 // pred_fallthru
      _
    // Predicated region
    $region78: #{tpu_custom_call.1} parent=1 // pred_check
      _
    $region79: #{tpu_custom_call.1} parent=1 // pred_check_branch
      %101 = sbr.rel (0) target = $region81
    $region80: #{tpu_custom_call.1} parent=1 // pred_region
      %102 = dma.done [#allocation9], 16
    $region81: #{tpu_custom_call.1} parent=1 // pred_fallthru
      _
    %v103 = vld [vmem:[#allocation2] sm:$0xff]
    %v104 = vld [vmem:[#allocation2 + $0x8] sm:$0xff]
    %v105 = vld [vmem:[#allocation5] sm:$0xff]
    %v106 = vadd.f32 %v103, %v105
    %v107 = vadd.f32 %v104, %v105
    %v108 = vld [vmem:[%s2] sm:$0xff]
    %v109 = vld [vmem:[%s2 + $0x8] sm:$0xff]
    %v110 = vld [vmem:[%s2 + $0x10] sm:$0xff]
    %v111 = vld [vmem:[%s2 + $0x18] sm:$0xff]
    %v112 = vld [vmem:[%s3] sm:$0x1]
    %v114 = vlaneseq
    %v115 = vshrl.u32 %v114, 7
    %v116 = vsub.s32 0, %v115
    %v117 = vrot.slane %v112, %v116
    %vm119 = vcmask 261120
    %v121 = vsel %vm119, %v106, 0
    %v124 = vsel %vm119, %v107, 0
    %126 = vmatprep.subr.mxu0 0.0
    %127 = vmatpush1.msra.mxu0 %v108
    %128 = vmatprep.subr.mxu0 0.0
    %129 = vmatpush1.msra.mxu0 %v109
    %130 = vmatprep.subr.mxu0 0.0
    %131 = vmatpush1.msra.mxu0 %v110
    %132 = vmatprep.subr.mxu0 0.0
    %133 = vmatpush1.msra.mxu0 %v111
    %134 = vmatprep.subr.mxu0 0.0
    %135 = vmatpush1.msra.mxu0 0.0
    %136 = vmatprep.subr.mxu0 0.0
    %137 = vmatpush1.msra.mxu0 0.0
    %138 = vmatprep.subr.mxu0 0.0
    %139 = vmatpush1.msra.mxu0 0.0
    %140 = vmatprep.subr.mxu0 0.0
    %141 = vmatpush1.msra.mxu0 0.0
    %142 = vmatprep.subr.mxu0 0.0
    %143 = vmatpush1.msra.mxu0 0.0
    %144 = vmatprep.subr.mxu0 0.0
    %145 = vmatpush1.msra.mxu0 0.0
    %146 = vmatprep.subr.mxu0 0.0
    %147 = vmatpush1.msra.mxu0 0.0
    %148 = vmatprep.subr.mxu0 0.0
    %149 = vmatpush1.msra.mxu0 0.0
    %150 = vmatprep.subr.mxu0 0.0
    %151 = vmatpush1.msra.mxu0 0.0
    %152 = vmatprep.subr.mxu0 0.0
    %153 = vmatpush1.msra.mxu0 0.0
    %154 = vmatprep.subr.mxu0 0.0
    %155 = vmatpush1.msra.mxu0 0.0
    %156 = vmatprep.subr.mxu0 0.0
    %157 = vmatpush1.msra.mxu0 0.0
    %158 = vmatprep.subr.mxu0 0.0
    %159 = vmatpush1.msra.mxu0 0.0
    %160 = vmatprep.subr.mxu0 0.0
    %161 = vmatpush1.msra.mxu0 0.0
    %162 = vmatprep.subr.mxu0 0.0
    %163 = vmatpush1.msra.mxu0 0.0
    %164 = vmatprep.subr.mxu0 0.0
    %165 = vmatpush1.msra.mxu0 0.0
    %166 = vmatprep.subr.mxu0 0.0
    %167 = vmatpush1.msra.mxu0 0.0
    %168 = vmatprep.subr.mxu0 0.0
    %169 = vmatpush1.msra.mxu0 0.0
    %170 = vmatprep.subr.mxu0 0.0
    %171 = vmatpush1.msra.mxu0 0.0
    %172 = vmatprep.subr.mxu0 0.0
    %173 = vmatpush1.msra.mxu0 0.0
    %174 = vmatprep.subr.mxu0 0.0
    %175 = vmatpush1.msra.mxu0 0.0
    %176 = vmatprep.subr.mxu0 0.0
    %177 = vmatpush1.msra.mxu0 0.0
    %178 = vmatprep.subr.mxu0 0.0
    %179 = vmatpush1.msra.mxu0 0.0
    %180 = vmatprep.subr.mxu0 0.0
    %181 = vmatpush1.msra.mxu0 0.0
    %182 = vmatprep.subr.mxu0 0.0
    %183 = vmatpush1.msra.mxu0 0.0
    %184 = vmatprep.subr.mxu0 0.0
    %185 = vmatpush1.msra.mxu0 0.0
    %186 = vmatprep.subr.mxu0 0.0
    %187 = vmatpush1.msra.mxu0 0.0
    %188 = vmatprep.subr.mxu0 0.0
    %189 = vmatpush1.msra.mxu0 0.0
    %190 = vmatprep.mubr.f32.mxu0 0.0
    %191 = vmatmul.mubr.f32.gmra.mrb[0].mxu0 %v121
    %v192 = vpop.f32.mrb[0].mxu0
    %v193 = vadd.f32 %v117, %v192
    %v194 = vpop.f32.mrb[0].mxu0
    %195 = vmatprep.mubr.f32.mxu0 0.0
    %196 = vmatmul.mubr.f32.gmra.mrb[0].mxu0 %v124
    %v197 = vpop.f32.mrb[0].mxu0
    %v198 = vadd.f32 %v117, %v197
    %v199 = vpop.f32.mrb[0].mxu0
    %200 = vdwg.mxu0
    %202 = vrot.lane.b32.xlu0 %v193, 96
    %v203 = vpop.permute.xlu0 %202
    %vm204 = vcmask 64512
    %v205 = vsel %vm204, %v193, 0
    %v207 = vsel %vm204, %v203, 0
    %209 = vmatprep.subr.mxu0 0.0
    %210 = vmatpush1.xpose.msra.mxu0 %v207
    %211 = vmatprep.subr.mxu0 0.0
    %212 = vmatpush1.xpose.msra.mxu0 0.0
    %213 = vmatprep.subr.mxu0 0.0
    %214 = vmatpush1.xpose.msra.mxu0 0.0
    %215 = vmatprep.subr.mxu0 0.0
    %216 = vmatpush1.xpose.msra.mxu0 0.0
    %217 = vmatprep.subr.mxu0 0.0
    %218 = vmatpush1.xpose.msra.mxu0 0.0
    %219 = vmatprep.subr.mxu0 0.0
    %220 = vmatpush1.xpose.msra.mxu0 0.0
    %221 = vmatprep.subr.mxu0 0.0
    %222 = vmatpush1.xpose.msra.mxu0 0.0
    %223 = vmatprep.subr.mxu0 0.0
    %224 = vmatpush1.xpose.msra.mxu0 0.0
    %225 = vmatprep.subr.mxu0 0.0
    %226 = vmatpush1.xpose.msra.mxu0 0.0
    %227 = vmatprep.subr.mxu0 0.0
    %228 = vmatpush1.xpose.msra.mxu0 0.0
    %229 = vmatprep.subr.mxu0 0.0
    %230 = vmatpush1.xpose.msra.mxu0 0.0
    %231 = vmatprep.subr.mxu0 0.0
    %232 = vmatpush1.xpose.msra.mxu0 0.0
    %233 = vmatprep.subr.mxu0 0.0
    %234 = vmatpush1.xpose.msra.mxu0 0.0
    %235 = vmatprep.subr.mxu0 0.0
    %236 = vmatpush1.xpose.msra.mxu0 0.0
    %237 = vmatprep.subr.mxu0 0.0
    %238 = vmatpush1.xpose.msra.mxu0 0.0
    %239 = vmatprep.subr.mxu0 0.0
    %240 = vmatpush1.xpose.msra.mxu0 0.0
    %241 = vmatprep.subr.mxu0 0.0
    %242 = vmatpush1.xpose.msra.mxu0 0.0
    %243 = vmatprep.subr.mxu0 0.0
    %244 = vmatpush1.xpose.msra.mxu0 0.0
    %245 = vmatprep.subr.mxu0 0.0
    %246 = vmatpush1.xpose.msra.mxu0 0.0
    %247 = vmatprep.subr.mxu0 0.0
    %248 = vmatpush1.xpose.msra.mxu0 0.0
    %249 = vmatprep.subr.mxu0 0.0
    %250 = vmatpush1.xpose.msra.mxu0 0.0
    %251 = vmatprep.subr.mxu0 0.0
    %252 = vmatpush1.xpose.msra.mxu0 0.0
    %253 = vmatprep.subr.mxu0 0.0
    %254 = vmatpush1.xpose.msra.mxu0 0.0
    %255 = vmatprep.subr.mxu0 0.0
    %256 = vmatpush1.xpose.msra.mxu0 0.0
    %257 = vmatprep.subr.mxu0 0.0
    %258 = vmatpush1.xpose.msra.mxu0 0.0
    %259 = vmatprep.subr.mxu0 0.0
    %260 = vmatpush1.xpose.msra.mxu0 0.0
    %261 = vmatprep.subr.mxu0 0.0
    %262 = vmatpush1.xpose.msra.mxu0 0.0
    %263 = vmatprep.subr.mxu0 0.0
    %264 = vmatpush1.xpose.msra.mxu0 0.0
    %265 = vmatprep.subr.mxu0 0.0
    %266 = vmatpush1.xpose.msra.mxu0 0.0
    %267 = vmatprep.subr.mxu0 0.0
    %268 = vmatpush1.xpose.msra.mxu0 0.0
    %269 = vmatprep.subr.mxu0 0.0
    %270 = vmatpush1.xpose.msra.mxu0 0.0
    %271 = vmatprep.subr.mxu0 0.0
    %272 = vmatpush1.xpose.msra.mxu0 0.0
    %273 = vmatprep.mubr.f32.mxu0 0.0
    %274 = vmatmul.mubr.f32.gmra.mrb[0].mxu0 %v205
    %v275 = vpop.f32.mrb[0].mxu0
    %v276 = vadd.f32 0.0, %v275
    %v277 = vpop.f32.mrb[0].mxu0
    %278 = vdwg.mxu0
    %280 = vrot.lane.b32.xlu0 %v198, 96
    %v281 = vpop.permute.xlu0 %280
    %v282 = vsel %vm204, %v198, 0
    %v284 = vsel %vm204, %v281, 0
    %286 = vmatprep.subr.mxu0 0.0
    %287 = vmatpush1.xpose.msra.mxu0 %v284
    %288 = vmatprep.subr.mxu0 0.0
    %289 = vmatpush1.xpose.msra.mxu0 0.0
    %290 = vmatprep.subr.mxu0 0.0
    %291 = vmatpush1.xpose.msra.mxu0 0.0
    %292 = vmatprep.subr.mxu0 0.0
    %293 = vmatpush1.xpose.msra.mxu0 0.0
    %294 = vmatprep.subr.mxu0 0.0
    %295 = vmatpush1.xpose.msra.mxu0 0.0
    %296 = vmatprep.subr.mxu0 0.0
    %297 = vmatpush1.xpose.msra.mxu0 0.0
    %298 = vmatprep.subr.mxu0 0.0
    %299 = vmatpush1.xpose.msra.mxu0 0.0
    %300 = vmatprep.subr.mxu0 0.0
    %301 = vmatpush1.xpose.msra.mxu0 0.0
    %302 = vmatprep.subr.mxu0 0.0
    %303 = vmatpush1.xpose.msra.mxu0 0.0
    %304 = vmatprep.subr.mxu0 0.0
    %305 = vmatpush1.xpose.msra.mxu0 0.0
    %306 = vmatprep.subr.mxu0 0.0
    %307 = vmatpush1.xpose.msra.mxu0 0.0
    %308 = vmatprep.subr.mxu0 0.0
    %309 = vmatpush1.xpose.msra.mxu0 0.0
    %310 = vmatprep.subr.mxu0 0.0
    %311 = vmatpush1.xpose.msra.mxu0 0.0
    %312 = vmatprep.subr.mxu0 0.0
    %313 = vmatpush1.xpose.msra.mxu0 0.0
    %314 = vmatprep.subr.mxu0 0.0
    %315 = vmatpush1.xpose.msra.mxu0 0.0
    %316 = vmatprep.subr.mxu0 0.0
    %317 = vmatpush1.xpose.msra.mxu0 0.0
    %318 = vmatprep.subr.mxu0 0.0
    %319 = vmatpush1.xpose.msra.mxu0 0.0
    %320 = vmatprep.subr.mxu0 0.0
    %321 = vmatpush1.xpose.msra.mxu0 0.0
    %322 = vmatprep.subr.mxu0 0.0
    %323 = vmatpush1.xpose.msra.mxu0 0.0
    %324 = vmatprep.subr.mxu0 0.0
    %325 = vmatpush1.xpose.msra.mxu0 0.0
    %326 = vmatprep.subr.mxu0 0.0
    %327 = vmatpush1.xpose.msra.mxu0 0.0
    %328 = vmatprep.subr.mxu0 0.0
    %329 = vmatpush1.xpose.msra.mxu0 0.0
    %330 = vmatprep.subr.mxu0 0.0
    %331 = vmatpush1.xpose.msra.mxu0 0.0
    %332 = vmatprep.subr.mxu0 0.0
    %333 = vmatpush1.xpose.msra.mxu0 0.0
    %334 = vmatprep.subr.mxu0 0.0
    %335 = vmatpush1.xpose.msra.mxu0 0.0
    %336 = vmatprep.subr.mxu0 0.0
    %337 = vmatpush1.xpose.msra.mxu0 0.0
    %338 = vmatprep.subr.mxu0 0.0
    %339 = vmatpush1.xpose.msra.mxu0 0.0
    %340 = vmatprep.subr.mxu0 0.0
    %341 = vmatpush1.xpose.msra.mxu0 0.0
    %342 = vmatprep.subr.mxu0 0.0
    %343 = vmatpush1.xpose.msra.mxu0 0.0
    %344 = vmatprep.subr.mxu0 0.0
    %345 = vmatpush1.xpose.msra.mxu0 0.0
    %346 = vmatprep.subr.mxu0 0.0
    %347 = vmatpush1.xpose.msra.mxu0 0.0
    %348 = vmatprep.subr.mxu0 0.0
    %349 = vmatpush1.xpose.msra.mxu0 0.0
    %350 = vmatprep.mubr.f32.mxu0 0.0
    %351 = vmatmul.mubr.f32.gmra.mrb[0].mxu0 %v282
    %v352 = vpop.f32.mrb[0].mxu0
    %v353 = vadd.f32 0.0, %v352
    %v354 = vpop.f32.mrb[0].mxu0
    %355 = vdwg.mxu0
    %v356 = vmul.f32 %v276, 0.35355338
    %v357 = vmul.f32 %v353, 0.35355338
    %v358 = vsel %vm204, %v356, -inf
    %359 = vmax.xlane.f32.xlu0 %v358
    %v360 = vpop.xlane.xlu0 %359
    %v361 = vsel %vm204, %v357, -inf
    %362 = vmax.xlane.f32.xlu0 %v361
    %v363 = vpop.xlane.xlu0 %362
    %v364 = vsub.f32 %v356, %v360
    %v365 = vsub.f32 %v357, %v363
    %v366 = vmul.f32 %v364, 1.442695
    %v367 = vpow.pop %v366
    %v368 = vmul.f32 %v365, 1.442695
    %v369 = vpow.pop %v368
    %v370 = vsel %vm204, %v367, 0.0
    %371 = vadd.xlane.f32.xlu0 %v370
    %v372 = vpop.xlane.xlu0 %371
    %v373 = vsel %vm204, %v369, 0.0
    %374 = vadd.xlane.f32.xlu0 %v373
    %v375 = vpop.xlane.xlu0 %374
    %v376 = vrcp.pop %v372
    %v377 = vmul.f32 %v367, %v376
    %v378 = vrcp.pop %v375
    %v379 = vmul.f32 %v369, %v378
    %380 = vrot.lane.b32.xlu0 %v193, 64
    %v381 = vpop.permute.xlu0 %380
    %v384 = vsel %vm204, %v377, 0
    %386 = vmatprep.subr.mxu0 0.0
    %387 = vmatpush1.msra.mxu0 %v381
    %388 = vmatprep.subr.mxu0 0.0
    %389 = vmatpush1.msra.mxu0 0.0
    %390 = vmatprep.subr.mxu0 0.0
    %391 = vmatpush1.msra.mxu0 0.0
    %392 = vmatprep.subr.mxu0 0.0
    %393 = vmatpush1.msra.mxu0 0.0
    %394 = vmatprep.subr.mxu0 0.0
    %395 = vmatpush1.msra.mxu0 0.0
    %396 = vmatprep.subr.mxu0 0.0
    %397 = vmatpush1.msra.mxu0 0.0
    %398 = vmatprep.subr.mxu0 0.0
    %399 = vmatpush1.msra.mxu0 0.0
    %400 = vmatprep.subr.mxu0 0.0
    %401 = vmatpush1.msra.mxu0 0.0
    %402 = vmatprep.subr.mxu0 0.0
    %403 = vmatpush1.msra.mxu0 0.0
    %404 = vmatprep.subr.mxu0 0.0
    %405 = vmatpush1.msra.mxu0 0.0
    %406 = vmatprep.subr.mxu0 0.0
    %407 = vmatpush1.msra.mxu0 0.0
    %408 = vmatprep.subr.mxu0 0.0
    %409 = vmatpush1.msra.mxu0 0.0
    %410 = vmatprep.subr.mxu0 0.0
    %411 = vmatpush1.msra.mxu0 0.0
    %412 = vmatprep.subr.mxu0 0.0
    %413 = vmatpush1.msra.mxu0 0.0
    %414 = vmatprep.subr.mxu0 0.0
    %415 = vmatpush1.msra.mxu0 0.0
    %416 = vmatprep.subr.mxu0 0.0
    %417 = vmatpush1.msra.mxu0 0.0
    %418 = vmatprep.subr.mxu0 0.0
    %419 = vmatpush1.msra.mxu0 0.0
    %420 = vmatprep.subr.mxu0 0.0
    %421 = vmatpush1.msra.mxu0 0.0
    %422 = vmatprep.subr.mxu0 0.0
    %423 = vmatpush1.msra.mxu0 0.0
    %424 = vmatprep.subr.mxu0 0.0
    %425 = vmatpush1.msra.mxu0 0.0
    %426 = vmatprep.subr.mxu0 0.0
    %427 = vmatpush1.msra.mxu0 0.0
    %428 = vmatprep.subr.mxu0 0.0
    %429 = vmatpush1.msra.mxu0 0.0
    %430 = vmatprep.subr.mxu0 0.0
    %431 = vmatpush1.msra.mxu0 0.0
    %432 = vmatprep.subr.mxu0 0.0
    %433 = vmatpush1.msra.mxu0 0.0
    %434 = vmatprep.subr.mxu0 0.0
    %435 = vmatpush1.msra.mxu0 0.0
    %436 = vmatprep.subr.mxu0 0.0
    %437 = vmatpush1.msra.mxu0 0.0
    %438 = vmatprep.subr.mxu0 0.0
    %439 = vmatpush1.msra.mxu0 0.0
    %440 = vmatprep.subr.mxu0 0.0
    %441 = vmatpush1.msra.mxu0 0.0
    %442 = vmatprep.subr.mxu0 0.0
    %443 = vmatpush1.msra.mxu0 0.0
    %444 = vmatprep.subr.mxu0 0.0
    %445 = vmatpush1.msra.mxu0 0.0
    %446 = vmatprep.subr.mxu0 0.0
    %447 = vmatpush1.msra.mxu0 0.0
    %448 = vmatprep.subr.mxu0 0.0
    %449 = vmatpush1.msra.mxu0 0.0
    %450 = vmatprep.mubr.f32.mxu0 0.0
    %451 = vmatmul.mubr.f32.gmra.mrb[0].mxu0 %v384
    %v452 = vpop.f32.mrb[0].mxu0
    %v453 = vadd.f32 0.0, %v452
    %v454 = vpop.f32.mrb[0].mxu0
    %455 = vdwg.mxu0
    %456 = vrot.lane.b32.xlu0 %v198, 64
    %v457 = vpop.permute.xlu0 %456
    %v460 = vsel %vm204, %v379, 0
    %462 = vmatprep.subr.mxu0 0.0
    %463 = vmatpush1.msra.mxu0 %v457
    %464 = vmatprep.subr.mxu0 0.0
    %465 = vmatpush1.msra.mxu0 0.0
    %466 = vmatprep.subr.mxu0 0.0
    %467 = vmatpush1.msra.mxu0 0.0
    %468 = vmatprep.subr.mxu0 0.0
    %469 = vmatpush1.msra.mxu0 0.0
    %470 = vmatprep.subr.mxu0 0.0
    %471 = vmatpush1.msra.mxu0 0.0
    %472 = vmatprep.subr.mxu0 0.0
    %473 = vmatpush1.msra.mxu0 0.0
    %474 = vmatprep.subr.mxu0 0.0
    %475 = vmatpush1.msra.mxu0 0.0
    %476 = vmatprep.subr.mxu0 0.0
    %477 = vmatpush1.msra.mxu0 0.0
    %478 = vmatprep.subr.mxu0 0.0
    %479 = vmatpush1.msra.mxu0 0.0
    %480 = vmatprep.subr.mxu0 0.0
    %481 = vmatpush1.msra.mxu0 0.0
    %482 = vmatprep.subr.mxu0 0.0
    %483 = vmatpush1.msra.mxu0 0.0
    %484 = vmatprep.subr.mxu0 0.0
    %485 = vmatpush1.msra.mxu0 0.0
    %486 = vmatprep.subr.mxu0 0.0
    %487 = vmatpush1.msra.mxu0 0.0
    %488 = vmatprep.subr.mxu0 0.0
    %489 = vmatpush1.msra.mxu0 0.0
    %490 = vmatprep.subr.mxu0 0.0
    %491 = vmatpush1.msra.mxu0 0.0
    %492 = vmatprep.subr.mxu0 0.0
    %493 = vmatpush1.msra.mxu0 0.0
    %494 = vmatprep.subr.mxu0 0.0
    %495 = vmatpush1.msra.mxu0 0.0
    %496 = vmatprep.subr.mxu0 0.0
    %497 = vmatpush1.msra.mxu0 0.0
    %498 = vmatprep.subr.mxu0 0.0
    %499 = vmatpush1.msra.mxu0 0.0
    %500 = vmatprep.subr.mxu0 0.0
    %501 = vmatpush1.msra.mxu0 0.0
    %502 = vmatprep.subr.mxu0 0.0
    %503 = vmatpush1.msra.mxu0 0.0
    %504 = vmatprep.subr.mxu0 0.0
    %505 = vmatpush1.msra.mxu0 0.0
    %506 = vmatprep.subr.mxu0 0.0
    %507 = vmatpush1.msra.mxu0 0.0
    %508 = vmatprep.subr.mxu0 0.0
    %509 = vmatpush1.msra.mxu0 0.0
    %510 = vmatprep.subr.mxu0 0.0
    %511 = vmatpush1.msra.mxu0 0.0
    %512 = vmatprep.subr.mxu0 0.0
    %513 = vmatpush1.msra.mxu0 0.0
    %514 = vmatprep.subr.mxu0 0.0
    %515 = vmatpush1.msra.mxu0 0.0
    %516 = vmatprep.subr.mxu0 0.0
    %517 = vmatpush1.msra.mxu0 0.0
    %518 = vmatprep.subr.mxu0 0.0
    %519 = vmatpush1.msra.mxu0 0.0
    %520 = vmatprep.subr.mxu0 0.0
    %521 = vmatpush1.msra.mxu0 0.0
    %522 = vmatprep.subr.mxu0 0.0
    %523 = vmatpush1.msra.mxu0 0.0
    %524 = vmatprep.subr.mxu0 0.0
    %525 = vmatpush1.msra.mxu0 0.0
    %526 = vmatprep.mubr.f32.mxu0 0.0
    %527 = vmatmul.mubr.f32.gmra.mrb[0].mxu0 %v460
    %v528 = vpop.f32.mrb[0].mxu0
    %v529 = vadd.f32 0.0, %v528
    %v530 = vpop.f32.mrb[0].mxu0
    %531 = vdwg.mxu0
    %532 = vrot.lane.b32.xlu0 %v193, 120
    %v533 = vpop.permute.xlu0 %532
    %534 = vrot.lane.b32.xlu0 %v193, 88
    %v535 = vpop.permute.xlu0 %534
    %v536 = vsel %vm204, %v533, 0
    %v538 = vsel %vm204, %v535, 0
    %540 = vmatprep.subr.mxu0 0.0
    %541 = vmatpush1.xpose.msra.mxu0 %v538
    %542 = vmatprep.subr.mxu0 0.0
    %543 = vmatpush1.xpose.msra.mxu0 0.0
    %544 = vmatprep.subr.mxu0 0.0
    %545 = vmatpush1.xpose.msra.mxu0 0.0
    %546 = vmatprep.subr.mxu0 0.0
    %547 = vmatpush1.xpose.msra.mxu0 0.0
    %548 = vmatprep.subr.mxu0 0.0
    %549 = vmatpush1.xpose.msra.mxu0 0.0
    %550 = vmatprep.subr.mxu0 0.0
    %551 = vmatpush1.xpose.msra.mxu0 0.0
    %552 = vmatprep.subr.mxu0 0.0
    %553 = vmatpush1.xpose.msra.mxu0 0.0
    %554 = vmatprep.subr.mxu0 0.0
    %555 = vmatpush1.xpose.msra.mxu0 0.0
    %556 = vmatprep.subr.mxu0 0.0
    %557 = vmatpush1.xpose.msra.mxu0 0.0
    %558 = vmatprep.subr.mxu0 0.0
    %559 = vmatpush1.xpose.msra.mxu0 0.0
    %560 = vmatprep.subr.mxu0 0.0
    %561 = vmatpush1.xpose.msra.mxu0 0.0
    %562 = vmatprep.subr.mxu0 0.0
    %563 = vmatpush1.xpose.msra.mxu0 0.0
    %564 = vmatprep.subr.mxu0 0.0
    %565 = vmatpush1.xpose.msra.mxu0 0.0
    %566 = vmatprep.subr.mxu0 0.0
    %567 = vmatpush1.xpose.msra.mxu0 0.0
    %568 = vmatprep.subr.mxu0 0.0
    %569 = vmatpush1.xpose.msra.mxu0 0.0
    %570 = vmatprep.subr.mxu0 0.0
    %571 = vmatpush1.xpose.msra.mxu0 0.0
    %572 = vmatprep.subr.mxu0 0.0
    %573 = vmatpush1.xpose.msra.mxu0 0.0
    %574 = vmatprep.subr.mxu0 0.0
    %575 = vmatpush1.xpose.msra.mxu0 0.0
    %576 = vmatprep.subr.mxu0 0.0
    %577 = vmatpush1.xpose.msra.mxu0 0.0
    %578 = vmatprep.subr.mxu0 0.0
    %579 = vmatpush1.xpose.msra.mxu0 0.0
    %580 = vmatprep.subr.mxu0 0.0
    %581 = vmatpush1.xpose.msra.mxu0 0.0
    %582 = vmatprep.subr.mxu0 0.0
    %583 = vmatpush1.xpose.msra.mxu0 0.0
    %584 = vmatprep.subr.mxu0 0.0
    %585 = vmatpush1.xpose.msra.mxu0 0.0
    %586 = vmatprep.subr.mxu0 0.0
    %587 = vmatpush1.xpose.msra.mxu0 0.0
    %588 = vmatprep.subr.mxu0 0.0
    %589 = vmatpush1.xpose.msra.mxu0 0.0
    %590 = vmatprep.subr.mxu0 0.0
    %591 = vmatpush1.xpose.msra.mxu0 0.0
    %592 = vmatprep.subr.mxu0 0.0
    %593 = vmatpush1.xpose.msra.mxu0 0.0
    %594 = vmatprep.subr.mxu0 0.0
    %595 = vmatpush1.xpose.msra.mxu0 0.0
    %596 = vmatprep.subr.mxu0 0.0
    %597 = vmatpush1.xpose.msra.mxu0 0.0
    %598 = vmatprep.subr.mxu0 0.0
    %599 = vmatpush1.xpose.msra.mxu0 0.0
    %600 = vmatprep.subr.mxu0 0.0
    %601 = vmatpush1.xpose.msra.mxu0 0.0
    %602 = vmatprep.subr.mxu0 0.0
    %603 = vmatpush1.xpose.msra.mxu0 0.0
    %604 = vmatprep.mubr.f32.mxu0 0.0
    %605 = vmatmul.mubr.f32.gmra.mrb[0].mxu0 %v536
    %v606 = vpop.f32.mrb[0].mxu0
    %v607 = vadd.f32 0.0, %v606
    %v608 = vpop.f32.mrb[0].mxu0
    %609 = vdwg.mxu0
    %610 = vrot.lane.b32.xlu0 %v198, 120
    %v611 = vpop.permute.xlu0 %610
    %612 = vrot.lane.b32.xlu0 %v198, 88
    %v613 = vpop.permute.xlu0 %612
    %v614 = vsel %vm204, %v611, 0
    %v616 = vsel %vm204, %v613, 0
    %618 = vmatprep.subr.mxu0 0.0
    %619 = vmatpush1.xpose.msra.mxu0 %v616
    %620 = vmatprep.subr.mxu0 0.0
    %621 = vmatpush1.xpose.msra.mxu0 0.0
    %622 = vmatprep.subr.mxu0 0.0
    %623 = vmatpush1.xpose.msra.mxu0 0.0
    %624 = vmatprep.subr.mxu0 0.0
    %625 = vmatpush1.xpose.msra.mxu0 0.0
    %626 = vmatprep.subr.mxu0 0.0
    %627 = vmatpush1.xpose.msra.mxu0 0.0
    %628 = vmatprep.subr.mxu0 0.0
    %629 = vmatpush1.xpose.msra.mxu0 0.0
    %630 = vmatprep.subr.mxu0 0.0
    %631 = vmatpush1.xpose.msra.mxu0 0.0
    %632 = vmatprep.subr.mxu0 0.0
    %633 = vmatpush1.xpose.msra.mxu0 0.0
    %634 = vmatprep.subr.mxu0 0.0
    %635 = vmatpush1.xpose.msra.mxu0 0.0
    %636 = vmatprep.subr.mxu0 0.0
    %637 = vmatpush1.xpose.msra.mxu0 0.0
    %638 = vmatprep.subr.mxu0 0.0
    %639 = vmatpush1.xpose.msra.mxu0 0.0
    %640 = vmatprep.subr.mxu0 0.0
    %641 = vmatpush1.xpose.msra.mxu0 0.0
    %642 = vmatprep.subr.mxu0 0.0
    %643 = vmatpush1.xpose.msra.mxu0 0.0
    %644 = vmatprep.subr.mxu0 0.0
    %645 = vmatpush1.xpose.msra.mxu0 0.0
    %646 = vmatprep.subr.mxu0 0.0
    %647 = vmatpush1.xpose.msra.mxu0 0.0
    %648 = vmatprep.subr.mxu0 0.0
    %649 = vmatpush1.xpose.msra.mxu0 0.0
    %650 = vmatprep.subr.mxu0 0.0
    %651 = vmatpush1.xpose.msra.mxu0 0.0
    %652 = vmatprep.subr.mxu0 0.0
    %653 = vmatpush1.xpose.msra.mxu0 0.0
    %654 = vmatprep.subr.mxu0 0.0
    %655 = vmatpush1.xpose.msra.mxu0 0.0
    %656 = vmatprep.subr.mxu0 0.0
    %657 = vmatpush1.xpose.msra.mxu0 0.0
    %658 = vmatprep.subr.mxu0 0.0
    %659 = vmatpush1.xpose.msra.mxu0 0.0
    %660 = vmatprep.subr.mxu0 0.0
    %661 = vmatpush1.xpose.msra.mxu0 0.0
    %662 = vmatprep.subr.mxu0 0.0
    %663 = vmatpush1.xpose.msra.mxu0 0.0
    %664 = vmatprep.subr.mxu0 0.0
    %665 = vmatpush1.xpose.msra.mxu0 0.0
    %666 = vmatprep.subr.mxu0 0.0
    %667 = vmatpush1.xpose.msra.mxu0 0.0
    %668 = vmatprep.subr.mxu0 0.0
    %669 = vmatpush1.xpose.msra.mxu0 0.0
    %670 = vmatprep.subr.mxu0 0.0
    %671 = vmatpush1.xpose.msra.mxu0 0.0
    %672 = vmatprep.subr.mxu0 0.0
    %673 = vmatpush1.xpose.msra.mxu0 0.0
    %674 = vmatprep.subr.mxu0 0.0
    %675 = vmatpush1.xpose.msra.mxu0 0.0
    %676 = vmatprep.subr.mxu0 0.0
    %677 = vmatpush1.xpose.msra.mxu0 0.0
    %678 = vmatprep.subr.mxu0 0.0
    %679 = vmatpush1.xpose.msra.mxu0 0.0
    %680 = vmatprep.subr.mxu0 0.0
    %681 = vmatpush1.xpose.msra.mxu0 0.0
    %682 = vmatprep.mubr.f32.mxu0 0.0
    %683 = vmatmul.mubr.f32.gmra.mrb[0].mxu0 %v614
    %v684 = vpop.f32.mrb[0].mxu0
    %v685 = vadd.f32 0.0, %v684
    %v686 = vpop.f32.mrb[0].mxu0
    %687 = vdwg.mxu0
    %v688 = vmul.f32 %v607, 0.35355338
    %v689 = vmul.f32 %v685, 0.35355338
    %v690 = vsel %vm204, %v688, -inf
    %691 = vmax.xlane.f32.xlu0 %v690
    %v692 = vpop.xlane.xlu0 %691
    %v693 = vsel %vm204, %v689, -inf
    %694 = vmax.xlane.f32.xlu0 %v693
    %v695 = vpop.xlane.xlu0 %694
    %v696 = vsub.f32 %v688, %v692
    %v697 = vsub.f32 %v689, %v695
    %v698 = vmul.f32 %v696, 1.442695
    %v699 = vpow.pop %v698
    %v700 = vmul.f32 %v697, 1.442695
    %v701 = vpow.pop %v700
    %v702 = vsel %vm204, %v699, 0.0
    %703 = vadd.xlane.f32.xlu0 %v702
    %v704 = vpop.xlane.xlu0 %703
    %v705 = vsel %vm204, %v701, 0.0
    %706 = vadd.xlane.f32.xlu0 %v705
    %v707 = vpop.xlane.xlu0 %706
    %v708 = vrcp.pop %v704
    %v709 = vmul.f32 %v699, %v708
    %v710 = vrcp.pop %v707
    %v711 = vmul.f32 %v701, %v710
    %712 = vrot.lane.b32.xlu0 %v193, 56
    %v713 = vpop.permute.xlu0 %712
    %v716 = vsel %vm204, %v709, 0
    %718 = vmatprep.subr.mxu0 0.0
    %719 = vmatpush1.msra.mxu0 %v713
    %720 = vmatprep.subr.mxu0 0.0
    %721 = vmatpush1.msra.mxu0 0.0
    %722 = vmatprep.subr.mxu0 0.0
    %723 = vmatpush1.msra.mxu0 0.0
    %724 = vmatprep.subr.mxu0 0.0
    %725 = vmatpush1.msra.mxu0 0.0
    %726 = vmatprep.subr.mxu0 0.0
    %727 = vmatpush1.msra.mxu0 0.0
    %728 = vmatprep.subr.mxu0 0.0
    %729 = vmatpush1.msra.mxu0 0.0
    %730 = vmatprep.subr.mxu0 0.0
    %731 = vmatpush1.msra.mxu0 0.0
    %732 = vmatprep.subr.mxu0 0.0
    %733 = vmatpush1.msra.mxu0 0.0
    %734 = vmatprep.subr.mxu0 0.0
    %735 = vmatpush1.msra.mxu0 0.0
    %736 = vmatprep.subr.mxu0 0.0
    %737 = vmatpush1.msra.mxu0 0.0
    %738 = vmatprep.subr.mxu0 0.0
    %739 = vmatpush1.msra.mxu0 0.0
    %740 = vmatprep.subr.mxu0 0.0
    %741 = vmatpush1.msra.mxu0 0.0
    %742 = vmatprep.subr.mxu0 0.0
    %743 = vmatpush1.msra.mxu0 0.0
    %744 = vmatprep.subr.mxu0 0.0
    %745 = vmatpush1.msra.mxu0 0.0
    %746 = vmatprep.subr.mxu0 0.0
    %747 = vmatpush1.msra.mxu0 0.0
    %748 = vmatprep.subr.mxu0 0.0
    %749 = vmatpush1.msra.mxu0 0.0
    %750 = vmatprep.subr.mxu0 0.0
    %751 = vmatpush1.msra.mxu0 0.0
    %752 = vmatprep.subr.mxu0 0.0
    %753 = vmatpush1.msra.mxu0 0.0
    %754 = vmatprep.subr.mxu0 0.0
    %755 = vmatpush1.msra.mxu0 0.0
    %756 = vmatprep.subr.mxu0 0.0
    %757 = vmatpush1.msra.mxu0 0.0
    %758 = vmatprep.subr.mxu0 0.0
    %759 = vmatpush1.msra.mxu0 0.0
    %760 = vmatprep.subr.mxu0 0.0
    %761 = vmatpush1.msra.mxu0 0.0
    %762 = vmatprep.subr.mxu0 0.0
    %763 = vmatpush1.msra.mxu0 0.0
    %764 = vmatprep.subr.mxu0 0.0
    %765 = vmatpush1.msra.mxu0 0.0
    %766 = vmatprep.subr.mxu0 0.0
    %767 = vmatpush1.msra.mxu0 0.0
    %768 = vmatprep.subr.mxu0 0.0
    %769 = vmatpush1.msra.mxu0 0.0
    %770 = vmatprep.subr.mxu0 0.0
    %771 = vmatpush1.msra.mxu0 0.0
    %772 = vmatprep.subr.mxu0 0.0
    %773 = vmatpush1.msra.mxu0 0.0
    %774 = vmatprep.subr.mxu0 0.0
    %775 = vmatpush1.msra.mxu0 0.0
    %776 = vmatprep.subr.mxu0 0.0
    %777 = vmatpush1.msra.mxu0 0.0
    %778 = vmatprep.subr.mxu0 0.0
    %779 = vmatpush1.msra.mxu0 0.0
    %780 = vmatprep.subr.mxu0 0.0
    %781 = vmatpush1.msra.mxu0 0.0
    %782 = vmatprep.mubr.f32.mxu0 0.0
    %783 = vmatmul.mubr.f32.gmra.mrb[0].mxu0 %v716
    %v784 = vpop.f32.mrb[0].mxu0
    %v785 = vadd.f32 0.0, %v784
    %v786 = vpop.f32.mrb[0].mxu0
    %787 = vdwg.mxu0
    %788 = vrot.lane.b32.xlu0 %v198, 56
    %v789 = vpop.permute.xlu0 %788
    %v792 = vsel %vm204, %v711, 0
    %794 = vmatprep.subr.mxu0 0.0
    %795 = vmatpush1.msra.mxu0 %v789
    %796 = vmatprep.subr.mxu0 0.0
    %797 = vmatpush1.msra.mxu0 0.0
    %798 = vmatprep.subr.mxu0 0.0
    %799 = vmatpush1.msra.mxu0 0.0
    %800 = vmatprep.subr.mxu0 0.0
    %801 = vmatpush1.msra.mxu0 0.0
    %802 = vmatprep.subr.mxu0 0.0
    %803 = vmatpush1.msra.mxu0 0.0
    %804 = vmatprep.subr.mxu0 0.0
    %805 = vmatpush1.msra.mxu0 0.0
    %806 = vmatprep.subr.mxu0 0.0
    %807 = vmatpush1.msra.mxu0 0.0
    %808 = vmatprep.subr.mxu0 0.0
    %809 = vmatpush1.msra.mxu0 0.0
    %810 = vmatprep.subr.mxu0 0.0
    %811 = vmatpush1.msra.mxu0 0.0
    %812 = vmatprep.subr.mxu0 0.0
    %813 = vmatpush1.msra.mxu0 0.0
    %814 = vmatprep.subr.mxu0 0.0
    %815 = vmatpush1.msra.mxu0 0.0
    %816 = vmatprep.subr.mxu0 0.0
    %817 = vmatpush1.msra.mxu0 0.0
    %818 = vmatprep.subr.mxu0 0.0
    %819 = vmatpush1.msra.mxu0 0.0
    %820 = vmatprep.subr.mxu0 0.0
    %821 = vmatpush1.msra.mxu0 0.0
    %822 = vmatprep.subr.mxu0 0.0
    %823 = vmatpush1.msra.mxu0 0.0
    %824 = vmatprep.subr.mxu0 0.0
    %825 = vmatpush1.msra.mxu0 0.0
    %826 = vmatprep.subr.mxu0 0.0
    %827 = vmatpush1.msra.mxu0 0.0
    %828 = vmatprep.subr.mxu0 0.0
    %829 = vmatpush1.msra.mxu0 0.0
    %830 = vmatprep.subr.mxu0 0.0
    %831 = vmatpush1.msra.mxu0 0.0
    %832 = vmatprep.subr.mxu0 0.0
    %833 = vmatpush1.msra.mxu0 0.0
    %834 = vmatprep.subr.mxu0 0.0
    %835 = vmatpush1.msra.mxu0 0.0
    %836 = vmatprep.subr.mxu0 0.0
    %837 = vmatpush1.msra.mxu0 0.0
    %838 = vmatprep.subr.mxu0 0.0
    %839 = vmatpush1.msra.mxu0 0.0
    %840 = vmatprep.subr.mxu0 0.0
    %841 = vmatpush1.msra.mxu0 0.0
    %842 = vmatprep.subr.mxu0 0.0
    %843 = vmatpush1.msra.mxu0 0.0
    %844 = vmatprep.subr.mxu0 0.0
    %845 = vmatpush1.msra.mxu0 0.0
    %846 = vmatprep.subr.mxu0 0.0
    %847 = vmatpush1.msra.mxu0 0.0
    %848 = vmatprep.subr.mxu0 0.0
    %849 = vmatpush1.msra.mxu0 0.0
    %850 = vmatprep.subr.mxu0 0.0
    %851 = vmatpush1.msra.mxu0 0.0
    %852 = vmatprep.subr.mxu0 0.0
    %853 = vmatpush1.msra.mxu0 0.0
    %854 = vmatprep.subr.mxu0 0.0
    %855 = vmatpush1.msra.mxu0 0.0
    %856 = vmatprep.subr.mxu0 0.0
    %857 = vmatpush1.msra.mxu0 0.0
    %858 = vmatprep.mubr.f32.mxu0 0.0
    %859 = vmatmul.mubr.f32.gmra.mrb[0].mxu0 %v792
    %v860 = vpop.f32.mrb[0].mxu0
    %v861 = vadd.f32 0.0, %v860
    %v862 = vpop.f32.mrb[0].mxu0
    %863 = vdwg.mxu0
    %864 = vrot.lane.b32.xlu0 %v193, 112
    %v865 = vpop.permute.xlu0 %864
    %866 = vrot.lane.b32.xlu0 %v193, 80
    %v867 = vpop.permute.xlu0 %866
    %v868 = vsel %vm204, %v865, 0
    %v870 = vsel %vm204, %v867, 0
    %872 = vmatprep.subr.mxu0 0.0
    %873 = vmatpush1.xpose.msra.mxu0 %v870
    %874 = vmatprep.subr.mxu0 0.0
    %875 = vmatpush1.xpose.msra.mxu0 0.0
    %876 = vmatprep.subr.mxu0 0.0
    %877 = vmatpush1.xpose.msra.mxu0 0.0
    %878 = vmatprep.subr.mxu0 0.0
    %879 = vmatpush1.xpose.msra.mxu0 0.0
    %880 = vmatprep.subr.mxu0 0.0
    %881 = vmatpush1.xpose.msra.mxu0 0.0
    %882 = vmatprep.subr.mxu0 0.0
    %883 = vmatpush1.xpose.msra.mxu0 0.0
    %884 = vmatprep.subr.mxu0 0.0
    %885 = vmatpush1.xpose.msra.mxu0 0.0
    %886 = vmatprep.subr.mxu0 0.0
    %887 = vmatpush1.xpose.msra.mxu0 0.0
    %888 = vmatprep.subr.mxu0 0.0
    %889 = vmatpush1.xpose.msra.mxu0 0.0
    %890 = vmatprep.subr.mxu0 0.0
    %891 = vmatpush1.xpose.msra.mxu0 0.0
    %892 = vmatprep.subr.mxu0 0.0
    %893 = vmatpush1.xpose.msra.mxu0 0.0
    %894 = vmatprep.subr.mxu0 0.0
    %895 = vmatpush1.xpose.msra.mxu0 0.0
    %896 = vmatprep.subr.mxu0 0.0
    %897 = vmatpush1.xpose.msra.mxu0 0.0
    %898 = vmatprep.subr.mxu0 0.0
    %899 = vmatpush1.xpose.msra.mxu0 0.0
    %900 = vmatprep.subr.mxu0 0.0
    %901 = vmatpush1.xpose.msra.mxu0 0.0
    %902 = vmatprep.subr.mxu0 0.0
    %903 = vmatpush1.xpose.msra.mxu0 0.0
    %904 = vmatprep.subr.mxu0 0.0
    %905 = vmatpush1.xpose.msra.mxu0 0.0
    %906 = vmatprep.subr.mxu0 0.0
    %907 = vmatpush1.xpose.msra.mxu0 0.0
    %908 = vmatprep.subr.mxu0 0.0
    %909 = vmatpush1.xpose.msra.mxu0 0.0
    %910 = vmatprep.subr.mxu0 0.0
    %911 = vmatpush1.xpose.msra.mxu0 0.0
    %912 = vmatprep.subr.mxu0 0.0
    %913 = vmatpush1.xpose.msra.mxu0 0.0
    %914 = vmatprep.subr.mxu0 0.0
    %915 = vmatpush1.xpose.msra.mxu0 0.0
    %916 = vmatprep.subr.mxu0 0.0
    %917 = vmatpush1.xpose.msra.mxu0 0.0
    %918 = vmatprep.subr.mxu0 0.0
    %919 = vmatpush1.xpose.msra.mxu0 0.0
    %920 = vmatprep.subr.mxu0 0.0
    %921 = vmatpush1.xpose.msra.mxu0 0.0
    %922 = vmatprep.subr.mxu0 0.0
    %923 = vmatpush1.xpose.msra.mxu0 0.0
    %924 = vmatprep.subr.mxu0 0.0
    %925 = vmatpush1.xpose.msra.mxu0 0.0
    %926 = vmatprep.subr.mxu0 0.0
    %927 = vmatpush1.xpose.msra.mxu0 0.0
    %928 = vmatprep.subr.mxu0 0.0
    %929 = vmatpush1.xpose.msra.mxu0 0.0
    %930 = vmatprep.subr.mxu0 0.0
    %931 = vmatpush1.xpose.msra.mxu0 0.0
    %932 = vmatprep.subr.mxu0 0.0
    %933 = vmatpush1.xpose.msra.mxu0 0.0
    %934 = vmatprep.subr.mxu0 0.0
    %935 = vmatpush1.xpose.msra.mxu0 0.0
    %936 = vmatprep.mubr.f32.mxu0 0.0
    %937 = vmatmul.mubr.f32.gmra.mrb[0].mxu0 %v868
    %v938 = vpop.f32.mrb[0].mxu0
    %v939 = vadd.f32 0.0, %v938
    %v940 = vpop.f32.mrb[0].mxu0
    %941 = vdwg.mxu0
    %942 = vrot.lane.b32.xlu0 %v198, 112
    %v943 = vpop.permute.xlu0 %942
    %944 = vrot.lane.b32.xlu0 %v198, 80
    %v945 = vpop.permute.xlu0 %944
    %v946 = vsel %vm204, %v943, 0
    %v948 = vsel %vm204, %v945, 0
    %950 = vmatprep.subr.mxu0 0.0
    %951 = vmatpush1.xpose.msra.mxu0 %v948
    %952 = vmatprep.subr.mxu0 0.0
    %953 = vmatpush1.xpose.msra.mxu0 0.0
    %954 = vmatprep.subr.mxu0 0.0
    %955 = vmatpush1.xpose.msra.mxu0 0.0
    %956 = vmatprep.subr.mxu0 0.0
    %957 = vmatpush1.xpose.msra.mxu0 0.0
    %958 = vmatprep.subr.mxu0 0.0
    %959 = vmatpush1.xpose.msra.mxu0 0.0
    %960 = vmatprep.subr.mxu0 0.0
    %961 = vmatpush1.xpose.msra.mxu0 0.0
    %962 = vmatprep.subr.mxu0 0.0
    %963 = vmatpush1.xpose.msra.mxu0 0.0
    %964 = vmatprep.subr.mxu0 0.0
    %965 = vmatpush1.xpose.msra.mxu0 0.0
    %966 = vmatprep.subr.mxu0 0.0
    %967 = vmatpush1.xpose.msra.mxu0 0.0
    %968 = vmatprep.subr.mxu0 0.0
    %969 = vmatpush1.xpose.msra.mxu0 0.0
    %970 = vmatprep.subr.mxu0 0.0
    %971 = vmatpush1.xpose.msra.mxu0 0.0
    %972 = vmatprep.subr.mxu0 0.0
    %973 = vmatpush1.xpose.msra.mxu0 0.0
    %974 = vmatprep.subr.mxu0 0.0
    %975 = vmatpush1.xpose.msra.mxu0 0.0
    %976 = vmatprep.subr.mxu0 0.0
    %977 = vmatpush1.xpose.msra.mxu0 0.0
    %978 = vmatprep.subr.mxu0 0.0
    %979 = vmatpush1.xpose.msra.mxu0 0.0
    %980 = vmatprep.subr.mxu0 0.0
    %981 = vmatpush1.xpose.msra.mxu0 0.0
    %982 = vmatprep.subr.mxu0 0.0
    %983 = vmatpush1.xpose.msra.mxu0 0.0
    %984 = vmatprep.subr.mxu0 0.0
    %985 = vmatpush1.xpose.msra.mxu0 0.0
    %986 = vmatprep.subr.mxu0 0.0
    %987 = vmatpush1.xpose.msra.mxu0 0.0
    %988 = vmatprep.subr.mxu0 0.0
    %989 = vmatpush1.xpose.msra.mxu0 0.0
    %990 = vmatprep.subr.mxu0 0.0
    %991 = vmatpush1.xpose.msra.mxu0 0.0
    %992 = vmatprep.subr.mxu0 0.0
    %993 = vmatpush1.xpose.msra.mxu0 0.0
    %994 = vmatprep.subr.mxu0 0.0
    %995 = vmatpush1.xpose.msra.mxu0 0.0
    %996 = vmatprep.subr.mxu0 0.0
    %997 = vmatpush1.xpose.msra.mxu0 0.0
    %998 = vmatprep.subr.mxu0 0.0
    %999 = vmatpush1.xpose.msra.mxu0 0.0
    %1000 = vmatprep.subr.mxu0 0.0
    %1001 = vmatpush1.xpose.msra.mxu0 0.0
    %1002 = vmatprep.subr.mxu0 0.0
    %1003 = vmatpush1.xpose.msra.mxu0 0.0
    %1004 = vmatprep.subr.mxu0 0.0
    %1005 = vmatpush1.xpose.msra.mxu0 0.0
    %1006 = vmatprep.subr.mxu0 0.0
    %1007 = vmatpush1.xpose.msra.mxu0 0.0
    %1008 = vmatprep.subr.mxu0 0.0
    %1009 = vmatpush1.xpose.msra.mxu0 0.0
    %1010 = vmatprep.subr.mxu0 0.0
    %1011 = vmatpush1.xpose.msra.mxu0 0.0
    %1012 = vmatprep.subr.mxu0 0.0
    %1013 = vmatpush1.xpose.msra.mxu0 0.0
    %1014 = vmatprep.mubr.f32.mxu0 0.0
    %1015 = vmatmul.mubr.f32.gmra.mrb[0].mxu0 %v946
    %v1016 = vpop.f32.mrb[0].mxu0
    %v1017 = vadd.f32 0.0, %v1016
    %v1018 = vpop.f32.mrb[0].mxu0
    %1019 = vdwg.mxu0
    %v1020 = vmul.f32 %v939, 0.35355338
    %v1021 = vmul.f32 %v1017, 0.35355338
    %v1022 = vsel %vm204, %v1020, -inf
    %1023 = vmax.xlane.f32.xlu0 %v1022
    %v1024 = vpop.xlane.xlu0 %1023
    %v1025 = vsel %vm204, %v1021, -inf
    %1026 = vmax.xlane.f32.xlu0 %v1025
    %v1027 = vpop.xlane.xlu0 %1026
    %v1028 = vsub.f32 %v1020, %v1024
    %v1029 = vsub.f32 %v1021, %v1027
    %v1030 = vmul.f32 %v1028, 1.442695
    %v1031 = vpow.pop %v1030
    %v1032 = vmul.f32 %v1029, 1.442695
    %v1033 = vpow.pop %v1032
    %v1034 = vsel %vm204, %v1031, 0.0
    %1035 = vadd.xlane.f32.xlu0 %v1034
    %v1036 = vpop.xlane.xlu0 %1035
    %v1037 = vsel %vm204, %v1033, 0.0
    %1038 = vadd.xlane.f32.xlu0 %v1037
    %v1039 = vpop.xlane.xlu0 %1038
    %v1040 = vrcp.pop %v1036
    %v1041 = vmul.f32 %v1031, %v1040
    %v1042 = vrcp.pop %v1039
    %v1043 = vmul.f32 %v1033, %v1042
    %1044 = vrot.lane.b32.xlu0 %v193, 48
    %v1045 = vpop.permute.xlu0 %1044
    %v1048 = vsel %vm204, %v1041, 0
    %1050 = vmatprep.subr.mxu0 0.0
    %1051 = vmatpush1.msra.mxu0 %v1045
    %1052 = vmatprep.subr.mxu0 0.0
    %1053 = vmatpush1.msra.mxu0 0.0
    %1054 = vmatprep.subr.mxu0 0.0
    %1055 = vmatpush1.msra.mxu0 0.0
    %1056 = vmatprep.subr.mxu0 0.0
    %1057 = vmatpush1.msra.mxu0 0.0
    %1058 = vmatprep.subr.mxu0 0.0
    %1059 = vmatpush1.msra.mxu0 0.0
    %1060 = vmatprep.subr.mxu0 0.0
    %1061 = vmatpush1.msra.mxu0 0.0
    %1062 = vmatprep.subr.mxu0 0.0
    %1063 = vmatpush1.msra.mxu0 0.0
    %1064 = vmatprep.subr.mxu0 0.0
    %1065 = vmatpush1.msra.mxu0 0.0
    %1066 = vmatprep.subr.mxu0 0.0
    %1067 = vmatpush1.msra.mxu0 0.0
    %1068 = vmatprep.subr.mxu0 0.0
    %1069 = vmatpush1.msra.mxu0 0.0
    %1070 = vmatprep.subr.mxu0 0.0
    %1071 = vmatpush1.msra.mxu0 0.0
    %1072 = vmatprep.subr.mxu0 0.0
    %1073 = vmatpush1.msra.mxu0 0.0
    %1074 = vmatprep.subr.mxu0 0.0
    %1075 = vmatpush1.msra.mxu0 0.0
    %1076 = vmatprep.subr.mxu0 0.0
    %1077 = vmatpush1.msra.mxu0 0.0
    %1078 = vmatprep.subr.mxu0 0.0
    %1079 = vmatpush1.msra.mxu0 0.0
    %1080 = vmatprep.subr.mxu0 0.0
    %1081 = vmatpush1.msra.mxu0 0.0
    %1082 = vmatprep.subr.mxu0 0.0
    %1083 = vmatpush1.msra.mxu0 0.0
    %1084 = vmatprep.subr.mxu0 0.0
    %1085 = vmatpush1.msra.mxu0 0.0
    %1086 = vmatprep.subr.mxu0 0.0
    %1087 = vmatpush1.msra.mxu0 0.0
    %1088 = vmatprep.subr.mxu0 0.0
    %1089 = vmatpush1.msra.mxu0 0.0
    %1090 = vmatprep.subr.mxu0 0.0
    %1091 = vmatpush1.msra.mxu0 0.0
    %1092 = vmatprep.subr.mxu0 0.0
    %1093 = vmatpush1.msra.mxu0 0.0
    %1094 = vmatprep.subr.mxu0 0.0
    %1095 = vmatpush1.msra.mxu0 0.0
    %1096 = vmatprep.subr.mxu0 0.0
    %1097 = vmatpush1.msra.mxu0 0.0
    %1098 = vmatprep.subr.mxu0 0.0
    %1099 = vmatpush1.msra.mxu0 0.0
    %1100 = vmatprep.subr.mxu0 0.0
    %1101 = vmatpush1.msra.mxu0 0.0
    %1102 = vmatprep.subr.mxu0 0.0
    %1103 = vmatpush1.msra.mxu0 0.0
    %1104 = vmatprep.subr.mxu0 0.0
    %1105 = vmatpush1.msra.mxu0 0.0
    %1106 = vmatprep.subr.mxu0 0.0
    %1107 = vmatpush1.msra.mxu0 0.0
    %1108 = vmatprep.subr.mxu0 0.0
    %1109 = vmatpush1.msra.mxu0 0.0
    %1110 = vmatprep.subr.mxu0 0.0
    %1111 = vmatpush1.msra.mxu0 0.0
    %1112 = vmatprep.subr.mxu0 0.0
    %1113 = vmatpush1.msra.mxu0 0.0
    %1114 = vmatprep.mubr.f32.mxu0 0.0
    %1115 = vmatmul.mubr.f32.gmra.mrb[0].mxu0 %v1048
    %v1116 = vpop.f32.mrb[0].mxu0
    %v1117 = vadd.f32 0.0, %v1116
    %v1118 = vpop.f32.mrb[0].mxu0
    %1119 = vdwg.mxu0
    %1120 = vrot.lane.b32.xlu0 %v198, 48
    %v1121 = vpop.permute.xlu0 %1120
    %v1124 = vsel %vm204, %v1043, 0
    %1126 = vmatprep.subr.mxu0 0.0
    %1127 = vmatpush1.msra.mxu0 %v1121
    %1128 = vmatprep.subr.mxu0 0.0
    %1129 = vmatpush1.msra.mxu0 0.0
    %1130 = vmatprep.subr.mxu0 0.0
    %1131 = vmatpush1.msra.mxu0 0.0
    %1132 = vmatprep.subr.mxu0 0.0
    %1133 = vmatpush1.msra.mxu0 0.0
    %1134 = vmatprep.subr.mxu0 0.0
    %1135 = vmatpush1.msra.mxu0 0.0
    %1136 = vmatprep.subr.mxu0 0.0
    %1137 = vmatpush1.msra.mxu0 0.0
    %1138 = vmatprep.subr.mxu0 0.0
    %1139 = vmatpush1.msra.mxu0 0.0
    %1140 = vmatprep.subr.mxu0 0.0
    %1141 = vmatpush1.msra.mxu0 0.0
    %1142 = vmatprep.subr.mxu0 0.0
    %1143 = vmatpush1.msra.mxu0 0.0
    %1144 = vmatprep.subr.mxu0 0.0
    %1145 = vmatpush1.msra.mxu0 0.0
    %1146 = vmatprep.subr.mxu0 0.0
    %1147 = vmatpush1.msra.mxu0 0.0
    %1148 = vmatprep.subr.mxu0 0.0
    %1149 = vmatpush1.msra.mxu0 0.0
    %1150 = vmatprep.subr.mxu0 0.0
    %1151 = vmatpush1.msra.mxu0 0.0
    %1152 = vmatprep.subr.mxu0 0.0
    %1153 = vmatpush1.msra.mxu0 0.0
    %1154 = vmatprep.subr.mxu0 0.0
    %1155 = vmatpush1.msra.mxu0 0.0
    %1156 = vmatprep.subr.mxu0 0.0
    %1157 = vmatpush1.msra.mxu0 0.0
    %1158 = vmatprep.subr.mxu0 0.0
    %1159 = vmatpush1.msra.mxu0 0.0
    %1160 = vmatprep.subr.mxu0 0.0
    %1161 = vmatpush1.msra.mxu0 0.0
    %1162 = vmatprep.subr.mxu0 0.0
    %1163 = vmatpush1.msra.mxu0 0.0
    %1164 = vmatprep.subr.mxu0 0.0
    %1165 = vmatpush1.msra.mxu0 0.0
    %1166 = vmatprep.subr.mxu0 0.0
    %1167 = vmatpush1.msra.mxu0 0.0
    %1168 = vmatprep.subr.mxu0 0.0
    %1169 = vmatpush1.msra.mxu0 0.0
    %1170 = vmatprep.subr.mxu0 0.0
    %1171 = vmatpush1.msra.mxu0 0.0
    %1172 = vmatprep.subr.mxu0 0.0
    %1173 = vmatpush1.msra.mxu0 0.0
    %1174 = vmatprep.subr.mxu0 0.0
    %1175 = vmatpush1.msra.mxu0 0.0
    %1176 = vmatprep.subr.mxu0 0.0
    %1177 = vmatpush1.msra.mxu0 0.0
    %1178 = vmatprep.subr.mxu0 0.0
    %1179 = vmatpush1.msra.mxu0 0.0
    %1180 = vmatprep.subr.mxu0 0.0
    %1181 = vmatpush1.msra.mxu0 0.0
    %1182 = vmatprep.subr.mxu0 0.0
    %1183 = vmatpush1.msra.mxu0 0.0
    %1184 = vmatprep.subr.mxu0 0.0
    %1185 = vmatpush1.msra.mxu0 0.0
    %1186 = vmatprep.subr.mxu0 0.0
    %1187 = vmatpush1.msra.mxu0 0.0
    %1188 = vmatprep.subr.mxu0 0.0
    %1189 = vmatpush1.msra.mxu0 0.0
    %1190 = vmatprep.mubr.f32.mxu0 0.0
    %1191 = vmatmul.mubr.f32.gmra.mrb[0].mxu0 %v1124
    %v1192 = vpop.f32.mrb[0].mxu0
    %v1193 = vadd.f32 0.0, %v1192
    %v1194 = vpop.f32.mrb[0].mxu0
    %1195 = vdwg.mxu0
    %1196 = vrot.lane.b32.xlu0 %v193, 104
    %v1197 = vpop.permute.xlu0 %1196
    %1198 = vrot.lane.b32.xlu0 %v193, 72
    %v1199 = vpop.permute.xlu0 %1198
    %v1200 = vsel %vm204, %v1197, 0
    %v1202 = vsel %vm204, %v1199, 0
    %1204 = vmatprep.subr.mxu0 0.0
    %1205 = vmatpush1.xpose.msra.mxu0 %v1202
    %1206 = vmatprep.subr.mxu0 0.0
    %1207 = vmatpush1.xpose.msra.mxu0 0.0
    %1208 = vmatprep.subr.mxu0 0.0
    %1209 = vmatpush1.xpose.msra.mxu0 0.0
    %1210 = vmatprep.subr.mxu0 0.0
    %1211 = vmatpush1.xpose.msra.mxu0 0.0
    %1212 = vmatprep.subr.mxu0 0.0
    %1213 = vmatpush1.xpose.msra.mxu0 0.0
    %1214 = vmatprep.subr.mxu0 0.0
    %1215 = vmatpush1.xpose.msra.mxu0 0.0
    %1216 = vmatprep.subr.mxu0 0.0
    %1217 = vmatpush1.xpose.msra.mxu0 0.0
    %1218 = vmatprep.subr.mxu0 0.0
    %1219 = vmatpush1.xpose.msra.mxu0 0.0
    %1220 = vmatprep.subr.mxu0 0.0
    %1221 = vmatpush1.xpose.msra.mxu0 0.0
    %1222 = vmatprep.subr.mxu0 0.0
    %1223 = vmatpush1.xpose.msra.mxu0 0.0
    %1224 = vmatprep.subr.mxu0 0.0
    %1225 = vmatpush1.xpose.msra.mxu0 0.0
    %1226 = vmatprep.subr.mxu0 0.0
    %1227 = vmatpush1.xpose.msra.mxu0 0.0
    %1228 = vmatprep.subr.mxu0 0.0
    %1229 = vmatpush1.xpose.msra.mxu0 0.0
    %1230 = vmatprep.subr.mxu0 0.0
    %1231 = vmatpush1.xpose.msra.mxu0 0.0
    %1232 = vmatprep.subr.mxu0 0.0
    %1233 = vmatpush1.xpose.msra.mxu0 0.0
    %1234 = vmatprep.subr.mxu0 0.0
    %1235 = vmatpush1.xpose.msra.mxu0 0.0
    %1236 = vmatprep.subr.mxu0 0.0
    %1237 = vmatpush1.xpose.msra.mxu0 0.0
    %1238 = vmatprep.subr.mxu0 0.0
    %1239 = vmatpush1.xpose.msra.mxu0 0.0
    %1240 = vmatprep.subr.mxu0 0.0
    %1241 = vmatpush1.xpose.msra.mxu0 0.0
    %1242 = vmatprep.subr.mxu0 0.0
    %1243 = vmatpush1.xpose.msra.mxu0 0.0
    %1244 = vmatprep.subr.mxu0 0.0
    %1245 = vmatpush1.xpose.msra.mxu0 0.0
    %1246 = vmatprep.subr.mxu0 0.0
    %1247 = vmatpush1.xpose.msra.mxu0 0.0
    %1248 = vmatprep.subr.mxu0 0.0
    %1249 = vmatpush1.xpose.msra.mxu0 0.0
    %1250 = vmatprep.subr.mxu0 0.0
    %1251 = vmatpush1.xpose.msra.mxu0 0.0
    %1252 = vmatprep.subr.mxu0 0.0
    %1253 = vmatpush1.xpose.msra.mxu0 0.0
    %1254 = vmatprep.subr.mxu0 0.0
    %1255 = vmatpush1.xpose.msra.mxu0 0.0
    %1256 = vmatprep.subr.mxu0 0.0
    %1257 = vmatpush1.xpose.msra.mxu0 0.0
    %1258 = vmatprep.subr.mxu0 0.0
    %1259 = vmatpush1.xpose.msra.mxu0 0.0
    %1260 = vmatprep.subr.mxu0 0.0
    %1261 = vmatpush1.xpose.msra.mxu0 0.0
    %1262 = vmatprep.subr.mxu0 0.0
    %1263 = vmatpush1.xpose.msra.mxu0 0.0
    %1264 = vmatprep.subr.mxu0 0.0
    %1265 = vmatpush1.xpose.msra.mxu0 0.0
    %1266 = vmatprep.subr.mxu0 0.0
    %1267 = vmatpush1.xpose.msra.mxu0 0.0
    %1268 = vmatprep.mubr.f32.mxu0 0.0
    %1269 = vmatmul.mubr.f32.gmra.mrb[0].mxu0 %v1200
    %v1270 = vpop.f32.mrb[0].mxu0
    %v1271 = vadd.f32 0.0, %v1270
    %v1272 = vpop.f32.mrb[0].mxu0
    %1273 = vdwg.mxu0
    %1274 = vrot.lane.b32.xlu0 %v198, 104
    %v1275 = vpop.permute.xlu0 %1274
    %1276 = vrot.lane.b32.xlu0 %v198, 72
    %v1277 = vpop.permute.xlu0 %1276
    %v1278 = vsel %vm204, %v1275, 0
    %v1280 = vsel %vm204, %v1277, 0
    %1282 = vmatprep.subr.mxu0 0.0
    %1283 = vmatpush1.xpose.msra.mxu0 %v1280
    %1284 = vmatprep.subr.mxu0 0.0
    %1285 = vmatpush1.xpose.msra.mxu0 0.0
    %1286 = vmatprep.subr.mxu0 0.0
    %1287 = vmatpush1.xpose.msra.mxu0 0.0
    %1288 = vmatprep.subr.mxu0 0.0
    %1289 = vmatpush1.xpose.msra.mxu0 0.0
    %1290 = vmatprep.subr.mxu0 0.0
    %1291 = vmatpush1.xpose.msra.mxu0 0.0
    %1292 = vmatprep.subr.mxu0 0.0
    %1293 = vmatpush1.xpose.msra.mxu0 0.0
    %1294 = vmatprep.subr.mxu0 0.0
    %1295 = vmatpush1.xpose.msra.mxu0 0.0
    %1296 = vmatprep.subr.mxu0 0.0
    %1297 = vmatpush1.xpose.msra.mxu0 0.0
    %1298 = vmatprep.subr.mxu0 0.0
    %1299 = vmatpush1.xpose.msra.mxu0 0.0
    %1300 = vmatprep.subr.mxu0 0.0
    %1301 = vmatpush1.xpose.msra.mxu0 0.0
    %1302 = vmatprep.subr.mxu0 0.0
    %1303 = vmatpush1.xpose.msra.mxu0 0.0
    %1304 = vmatprep.subr.mxu0 0.0
    %1305 = vmatpush1.xpose.msra.mxu0 0.0
    %1306 = vmatprep.subr.mxu0 0.0
    %1307 = vmatpush1.xpose.msra.mxu0 0.0
    %1308 = vmatprep.subr.mxu0 0.0
    %1309 = vmatpush1.xpose.msra.mxu0 0.0
    %1310 = vmatprep.subr.mxu0 0.0
    %1311 = vmatpush1.xpose.msra.mxu0 0.0
    %1312 = vmatprep.subr.mxu0 0.0
    %1313 = vmatpush1.xpose.msra.mxu0 0.0
    %1314 = vmatprep.subr.mxu0 0.0
    %1315 = vmatpush1.xpose.msra.mxu0 0.0
    %1316 = vmatprep.subr.mxu0 0.0
    %1317 = vmatpush1.xpose.msra.mxu0 0.0
    %1318 = vmatprep.subr.mxu0 0.0
    %1319 = vmatpush1.xpose.msra.mxu0 0.0
    %1320 = vmatprep.subr.mxu0 0.0
    %1321 = vmatpush1.xpose.msra.mxu0 0.0
    %1322 = vmatprep.subr.mxu0 0.0
    %1323 = vmatpush1.xpose.msra.mxu0 0.0
    %1324 = vmatprep.subr.mxu0 0.0
    %1325 = vmatpush1.xpose.msra.mxu0 0.0
    %1326 = vmatprep.subr.mxu0 0.0
    %1327 = vmatpush1.xpose.msra.mxu0 0.0
    %1328 = vmatprep.subr.mxu0 0.0
    %1329 = vmatpush1.xpose.msra.mxu0 0.0
    %1330 = vmatprep.subr.mxu0 0.0
    %1331 = vmatpush1.xpose.msra.mxu0 0.0
    %1332 = vmatprep.subr.mxu0 0.0
    %1333 = vmatpush1.xpose.msra.mxu0 0.0
    %1334 = vmatprep.subr.mxu0 0.0
    %1335 = vmatpush1.xpose.msra.mxu0 0.0
    %1336 = vmatprep.subr.mxu0 0.0
    %1337 = vmatpush1.xpose.msra.mxu0 0.0
    %1338 = vmatprep.subr.mxu0 0.0
    %1339 = vmatpush1.xpose.msra.mxu0 0.0
    %1340 = vmatprep.subr.mxu0 0.0
    %1341 = vmatpush1.xpose.msra.mxu0 0.0
    %1342 = vmatprep.subr.mxu0 0.0
    %1343 = vmatpush1.xpose.msra.mxu0 0.0
    %1344 = vmatprep.subr.mxu0 0.0
    %1345 = vmatpush1.xpose.msra.mxu0 0.0
    %1346 = vmatprep.mubr.f32.mxu0 0.0
    %1347 = vmatmul.mubr.f32.gmra.mrb[0].mxu0 %v1278
    %v1348 = vpop.f32.mrb[0].mxu0
    %v1349 = vadd.f32 0.0, %v1348
    %v1350 = vpop.f32.mrb[0].mxu0
    %1351 = vdwg.mxu0
    %v1352 = vmul.f32 %v1271, 0.35355338
    %v1353 = vmul.f32 %v1349, 0.35355338
    %v1354 = vsel %vm204, %v1352, -inf
    %1355 = vmax.xlane.f32.xlu0 %v1354
    %v1356 = vpop.xlane.xlu0 %1355
    %v1357 = vsel %vm204, %v1353, -inf
    %1358 = vmax.xlane.f32.xlu0 %v1357
    %v1359 = vpop.xlane.xlu0 %1358
    %v1360 = vsub.f32 %v1352, %v1356
    %v1361 = vsub.f32 %v1353, %v1359
    %v1362 = vmul.f32 %v1360, 1.442695
    %v1363 = vpow.pop %v1362
    %v1364 = vmul.f32 %v1361, 1.442695
    %v1365 = vpow.pop %v1364
    %v1366 = vsel %vm204, %v1363, 0.0
    %1367 = vadd.xlane.f32.xlu0 %v1366
    %v1368 = vpop.xlane.xlu0 %1367
    %v1369 = vsel %vm204, %v1365, 0.0
    %1370 = vadd.xlane.f32.xlu0 %v1369
    %v1371 = vpop.xlane.xlu0 %1370
    %v1372 = vrcp.pop %v1368
    %v1373 = vmul.f32 %v1363, %v1372
    %v1374 = vrcp.pop %v1371
    %v1375 = vmul.f32 %v1365, %v1374
    %1376 = vrot.lane.b32.xlu0 %v193, 40
    %v1377 = vpop.permute.xlu0 %1376
    %v1380 = vsel %vm204, %v1373, 0
    %1382 = vmatprep.subr.mxu0 0.0
    %1383 = vmatpush1.msra.mxu0 %v1377
    %1384 = vmatprep.subr.mxu0 0.0
    %1385 = vmatpush1.msra.mxu0 0.0
    %1386 = vmatprep.subr.mxu0 0.0
    %1387 = vmatpush1.msra.mxu0 0.0
    %1388 = vmatprep.subr.mxu0 0.0
    %1389 = vmatpush1.msra.mxu0 0.0
    %1390 = vmatprep.subr.mxu0 0.0
    %1391 = vmatpush1.msra.mxu0 0.0
    %1392 = vmatprep.subr.mxu0 0.0
    %1393 = vmatpush1.msra.mxu0 0.0
    %1394 = vmatprep.subr.mxu0 0.0
    %1395 = vmatpush1.msra.mxu0 0.0
    %1396 = vmatprep.subr.mxu0 0.0
    %1397 = vmatpush1.msra.mxu0 0.0
    %1398 = vmatprep.subr.mxu0 0.0
    %1399 = vmatpush1.msra.mxu0 0.0
    %1400 = vmatprep.subr.mxu0 0.0
    %1401 = vmatpush1.msra.mxu0 0.0
    %1402 = vmatprep.subr.mxu0 0.0
    %1403 = vmatpush1.msra.mxu0 0.0
    %1404 = vmatprep.subr.mxu0 0.0
    %1405 = vmatpush1.msra.mxu0 0.0
    %1406 = vmatprep.subr.mxu0 0.0
    %1407 = vmatpush1.msra.mxu0 0.0
    %1408 = vmatprep.subr.mxu0 0.0
    %1409 = vmatpush1.msra.mxu0 0.0
    %1410 = vmatprep.subr.mxu0 0.0
    %1411 = vmatpush1.msra.mxu0 0.0
    %1412 = vmatprep.subr.mxu0 0.0
    %1413 = vmatpush1.msra.mxu0 0.0
    %1414 = vmatprep.subr.mxu0 0.0
    %1415 = vmatpush1.msra.mxu0 0.0
    %1416 = vmatprep.subr.mxu0 0.0
    %1417 = vmatpush1.msra.mxu0 0.0
    %1418 = vmatprep.subr.mxu0 0.0
    %1419 = vmatpush1.msra.mxu0 0.0
    %1420 = vmatprep.subr.mxu0 0.0
    %1421 = vmatpush1.msra.mxu0 0.0
    %1422 = vmatprep.subr.mxu0 0.0
    %1423 = vmatpush1.msra.mxu0 0.0
    %1424 = vmatprep.subr.mxu0 0.0
    %1425 = vmatpush1.msra.mxu0 0.0
    %1426 = vmatprep.subr.mxu0 0.0
    %1427 = vmatpush1.msra.mxu0 0.0
    %1428 = vmatprep.subr.mxu0 0.0
    %1429 = vmatpush1.msra.mxu0 0.0
    %1430 = vmatprep.subr.mxu0 0.0
    %1431 = vmatpush1.msra.mxu0 0.0
    %1432 = vmatprep.subr.mxu0 0.0
    %1433 = vmatpush1.msra.mxu0 0.0
    %1434 = vmatprep.subr.mxu0 0.0
    %1435 = vmatpush1.msra.mxu0 0.0
    %1436 = vmatprep.subr.mxu0 0.0
    %1437 = vmatpush1.msra.mxu0 0.0
    %1438 = vmatprep.subr.mxu0 0.0
    %1439 = vmatpush1.msra.mxu0 0.0
    %1440 = vmatprep.subr.mxu0 0.0
    %1441 = vmatpush1.msra.mxu0 0.0
    %1442 = vmatprep.subr.mxu0 0.0
    %1443 = vmatpush1.msra.mxu0 0.0
    %1444 = vmatprep.subr.mxu0 0.0
    %1445 = vmatpush1.msra.mxu0 0.0
    %1446 = vmatprep.mubr.f32.mxu0 0.0
    %1447 = vmatmul.mubr.f32.gmra.mrb[0].mxu0 %v1380
    %v1448 = vpop.f32.mrb[0].mxu0
    %v1449 = vadd.f32 0.0, %v1448
    %v1450 = vpop.f32.mrb[0].mxu0
    %1451 = vdwg.mxu0
    %1452 = vrot.lane.b32.xlu0 %v198, 40
    %v1453 = vpop.permute.xlu0 %1452
    %v1456 = vsel %vm204, %v1375, 0
    %1458 = vmatprep.subr.mxu0 0.0
    %1459 = vmatpush1.msra.mxu0 %v1453
    %1460 = vmatprep.subr.mxu0 0.0
    %1461 = vmatpush1.msra.mxu0 0.0
    %1462 = vmatprep.subr.mxu0 0.0
    %1463 = vmatpush1.msra.mxu0 0.0
    %1464 = vmatprep.subr.mxu0 0.0
    %1465 = vmatpush1.msra.mxu0 0.0
    %1466 = vmatprep.subr.mxu0 0.0
    %1467 = vmatpush1.msra.mxu0 0.0
    %1468 = vmatprep.subr.mxu0 0.0
    %1469 = vmatpush1.msra.mxu0 0.0
    %1470 = vmatprep.subr.mxu0 0.0
    %1471 = vmatpush1.msra.mxu0 0.0
    %1472 = vmatprep.subr.mxu0 0.0
    %1473 = vmatpush1.msra.mxu0 0.0
    %1474 = vmatprep.subr.mxu0 0.0
    %1475 = vmatpush1.msra.mxu0 0.0
    %1476 = vmatprep.subr.mxu0 0.0
    %1477 = vmatpush1.msra.mxu0 0.0
    %1478 = vmatprep.subr.mxu0 0.0
    %1479 = vmatpush1.msra.mxu0 0.0
    %1480 = vmatprep.subr.mxu0 0.0
    %1481 = vmatpush1.msra.mxu0 0.0
    %1482 = vmatprep.subr.mxu0 0.0
    %1483 = vmatpush1.msra.mxu0 0.0
    %1484 = vmatprep.subr.mxu0 0.0
    %1485 = vmatpush1.msra.mxu0 0.0
    %1486 = vmatprep.subr.mxu0 0.0
    %1487 = vmatpush1.msra.mxu0 0.0
    %1488 = vmatprep.subr.mxu0 0.0
    %1489 = vmatpush1.msra.mxu0 0.0
    %1490 = vmatprep.subr.mxu0 0.0
    %1491 = vmatpush1.msra.mxu0 0.0
    %1492 = vmatprep.subr.mxu0 0.0
    %1493 = vmatpush1.msra.mxu0 0.0
    %1494 = vmatprep.subr.mxu0 0.0
    %1495 = vmatpush1.msra.mxu0 0.0
    %1496 = vmatprep.subr.mxu0 0.0
    %1497 = vmatpush1.msra.mxu0 0.0
    %1498 = vmatprep.subr.mxu0 0.0
    %1499 = vmatpush1.msra.mxu0 0.0
    %1500 = vmatprep.subr.mxu0 0.0
    %1501 = vmatpush1.msra.mxu0 0.0
    %1502 = vmatprep.subr.mxu0 0.0
    %1503 = vmatpush1.msra.mxu0 0.0
    %1504 = vmatprep.subr.mxu0 0.0
    %1505 = vmatpush1.msra.mxu0 0.0
    %1506 = vmatprep.subr.mxu0 0.0
    %1507 = vmatpush1.msra.mxu0 0.0
    %1508 = vmatprep.subr.mxu0 0.0
    %1509 = vmatpush1.msra.mxu0 0.0
    %1510 = vmatprep.subr.mxu0 0.0
    %1511 = vmatpush1.msra.mxu0 0.0
    %1512 = vmatprep.subr.mxu0 0.0
    %1513 = vmatpush1.msra.mxu0 0.0
    %1514 = vmatprep.subr.mxu0 0.0
    %1515 = vmatpush1.msra.mxu0 0.0
    %1516 = vmatprep.subr.mxu0 0.0
    %1517 = vmatpush1.msra.mxu0 0.0
    %1518 = vmatprep.subr.mxu0 0.0
    %1519 = vmatpush1.msra.mxu0 0.0
    %1520 = vmatprep.subr.mxu0 0.0
    %1521 = vmatpush1.msra.mxu0 0.0
    %1522 = vmatprep.mubr.f32.mxu0 0.0
    %1523 = vmatmul.mubr.f32.gmra.mrb[0].mxu0 %v1456
    %v1524 = vpop.f32.mrb[0].mxu0
    %v1525 = vadd.f32 0.0, %v1524
    %v1526 = vpop.f32.mrb[0].mxu0
    %1527 = vdwg.mxu0
    %1530 = vrot.lane.b32.xlu0 %v785, 8
    %v1531 = vpop.permute.xlu0 %1530
    %1532 = vrot.lane.b32.xlu0 %v861, 8
    %v1533 = vpop.permute.xlu0 %1532
    %1538 = vrot.lane.b32.xlu0 %v1117, 16
    %v1539 = vpop.permute.xlu0 %1538
    %1540 = vrot.lane.b32.xlu0 %v1193, 16
    %v1541 = vpop.permute.xlu0 %1540
    %1546 = vrot.lane.b32.xlu0 %v1449, 24
    %v1547 = vpop.permute.xlu0 %1546
    %1548 = vrot.lane.b32.xlu0 %v1525, 24
    %v1549 = vpop.permute.xlu0 %1548
    %v1552 = vsel %vm204, %v453, %v1531
    %v1553 = vsel %vm204, %v529, %v1533
    %vm1554 = vcmask 130048
    %v1555 = vsel %vm1554, %v1552, %v1539
    %v1556 = vsel %vm1554, %v1553, %v1541
    %vm1557 = vcmask 195584
    %v1558 = vsel %vm1557, %v1555, %v1547
    %v1559 = vsel %vm1557, %v1556, %v1549
    %v1560 = vld [vmem:[%s4] sm:$0xff]
    %v1561 = vld [vmem:[%s4 + $0x8] sm:$0xff]
    %v1562 = vld [vmem:[%s4 + $0x10] sm:$0xff]
    %v1563 = vld [vmem:[%s4 + $0x18] sm:$0xff]
    %v1564 = vld [vmem:[%s5] sm:$0x1]
    %v1566 = vlaneseq
    %v1567 = vshrl.u32 %v1566, 7
    %v1568 = vsub.s32 0, %v1567
    %v1569 = vrot.slane %v1564, %v1568
    %v1572 = vsel %vm119, %v1558, 0
    %v1575 = vsel %vm119, %v1559, 0
    %1577 = vmatprep.subr.mxu0 0.0
    %1578 = vmatpush1.msra.mxu0 %v1560
    %1579 = vmatprep.subr.mxu0 0.0
    %1580 = vmatpush1.msra.mxu0 %v1561
    %1581 = vmatprep.subr.mxu0 0.0
    %1582 = vmatpush1.msra.mxu0 %v1562
    %1583 = vmatprep.subr.mxu0 0.0
    %1584 = vmatpush1.msra.mxu0 %v1563
    %1585 = vmatprep.subr.mxu0 0.0
    %1586 = vmatpush1.msra.mxu0 0.0
    %1587 = vmatprep.subr.mxu0 0.0
    %1588 = vmatpush1.msra.mxu0 0.0
    %1589 = vmatprep.subr.mxu0 0.0
    %1590 = vmatpush1.msra.mxu0 0.0
    %1591 = vmatprep.subr.mxu0 0.0
    %1592 = vmatpush1.msra.mxu0 0.0
    %1593 = vmatprep.subr.mxu0 0.0
    %1594 = vmatpush1.msra.mxu0 0.0
    %1595 = vmatprep.subr.mxu0 0.0
    %1596 = vmatpush1.msra.mxu0 0.0
    %1597 = vmatprep.subr.mxu0 0.0
    %1598 = vmatpush1.msra.mxu0 0.0
    %1599 = vmatprep.subr.mxu0 0.0
    %1600 = vmatpush1.msra.mxu0 0.0
    %1601 = vmatprep.subr.mxu0 0.0
    %1602 = vmatpush1.msra.mxu0 0.0
    %1603 = vmatprep.subr.mxu0 0.0
    %1604 = vmatpush1.msra.mxu0 0.0
    %1605 = vmatprep.subr.mxu0 0.0
    %1606 = vmatpush1.msra.mxu0 0.0
    %1607 = vmatprep.subr.mxu0 0.0
    %1608 = vmatpush1.msra.mxu0 0.0
    %1609 = vmatprep.subr.mxu0 0.0
    %1610 = vmatpush1.msra.mxu0 0.0
    %1611 = vmatprep.subr.mxu0 0.0
    %1612 = vmatpush1.msra.mxu0 0.0
    %1613 = vmatprep.subr.mxu0 0.0
    %1614 = vmatpush1.msra.mxu0 0.0
    %1615 = vmatprep.subr.mxu0 0.0
    %1616 = vmatpush1.msra.mxu0 0.0
    %1617 = vmatprep.subr.mxu0 0.0
    %1618 = vmatpush1.msra.mxu0 0.0
    %1619 = vmatprep.subr.mxu0 0.0
    %1620 = vmatpush1.msra.mxu0 0.0
    %1621 = vmatprep.subr.mxu0 0.0
    %1622 = vmatpush1.msra.mxu0 0.0
    %1623 = vmatprep.subr.mxu0 0.0
    %1624 = vmatpush1.msra.mxu0 0.0
    %1625 = vmatprep.subr.mxu0 0.0
    %1626 = vmatpush1.msra.mxu0 0.0
    %1627 = vmatprep.subr.mxu0 0.0
    %1628 = vmatpush1.msra.mxu0 0.0
    %1629 = vmatprep.subr.mxu0 0.0
    %1630 = vmatpush1.msra.mxu0 0.0
    %1631 = vmatprep.subr.mxu0 0.0
    %1632 = vmatpush1.msra.mxu0 0.0
    %1633 = vmatprep.subr.mxu0 0.0
    %1634 = vmatpush1.msra.mxu0 0.0
    %1635 = vmatprep.subr.mxu0 0.0
    %1636 = vmatpush1.msra.mxu0 0.0
    %1637 = vmatprep.subr.mxu0 0.0
    %1638 = vmatpush1.msra.mxu0 0.0
    %1639 = vmatprep.subr.mxu0 0.0
    %1640 = vmatpush1.msra.mxu0 0.0
    %1641 = vmatprep.mubr.f32.mxu0 0.0
    %1642 = vmatmul.mubr.f32.gmra.mrb[0].mxu0 %v1572
    %v1643 = vpop.f32.mrb[0].mxu0
    %v1644 = vadd.f32 %v1569, %v1643
    %v1645 = vpop.f32.mrb[0].mxu0
    %1646 = vmatprep.mubr.f32.mxu0 0.0
    %1647 = vmatmul.mubr.f32.gmra.mrb[0].mxu0 %v1575
    %v1648 = vpop.f32.mrb[0].mxu0
    %v1649 = vadd.f32 %v1569, %v1648
    %v1650 = vpop.f32.mrb[0].mxu0
    %1651 = vdwg.mxu0
    %v1652 = vadd.f32 %v106, %v1644
    %v1653 = vadd.f32 %v107, %v1649
    %v1654 = vld [vmem:[%s10] sm:$0x1]
    %v1655 = vld [vmem:[%s11] sm:$0x1]
    %v1656 = vsel %vm119, %v1652, 0.0
    %1657 = vadd.xlane.f32.xlu0 %v1656
    %v1658 = vpop.xlane.xlu0 %1657
    %v1659 = vsel %vm119, %v1653, 0.0
    %1660 = vadd.xlane.f32.xlu0 %v1659
    %v1661 = vpop.xlane.xlu0 %1660
    %v1662 = vrcp.pop 32.0
    %v1663 = vmul.f32 %v1658, %v1662
    %v1664 = vmul.f32 %v1661, %v1662
    %v1665 = vsub.f32 %v1652, %v1663
    %v1666 = vsub.f32 %v1653, %v1664
    %v1667 = vmul.f32 %v1665, %v1665
    %v1668 = vmul.f32 %v1666, %v1666
    %v1669 = vsel %vm119, %v1667, 0.0
    %1670 = vadd.xlane.f32.xlu0 %v1669
    %v1671 = vpop.xlane.xlu0 %1670
    %v1672 = vsel %vm119, %v1668, 0.0
    %1673 = vadd.xlane.f32.xlu0 %v1672
    %v1674 = vpop.xlane.xlu0 %1673
    %v1675 = vmul.f32 %v1671, %v1662
    %v1676 = vmul.f32 %v1674, %v1662
    %v1677 = vadd.f32 %v1675, 1e-05
    %v1678 = vadd.f32 %v1676, 1e-05
    %v1679 = vrsqrt.pop %v1677
    %v1680 = vrsqrt.pop %v1678
    %v1681 = vmul.f32 %v1665, %v1679
    %v1682 = vmul.f32 %v1666, %v1680
    %v1684 = vlaneseq
    %v1685 = vshrl.u32 %v1684, 7
    %v1686 = vsub.s32 0, %v1685
    %v1687 = vrot.slane %v1654, %v1686
    %v1689 = vmul.f32 %v1681, %v1687
    %v1690 = vmul.f32 %v1682, %v1687
    %v1692 = vlaneseq
    %v1693 = vshrl.u32 %v1692, 7
    %v1694 = vsub.s32 0, %v1693
    %v1695 = vrot.slane %v1655, %v1694
    %v1697 = vadd.f32 %v1689, %v1695
    %v1698 = vadd.f32 %v1690, %v1695
    %v1699 = vld [vmem:[%s6] sm:$0xff]
    %v1700 = vld [vmem:[%s6 + $0x8] sm:$0xff]
    %v1701 = vld [vmem:[%s6 + $0x10] sm:$0xff]
    %v1702 = vld [vmem:[%s6 + $0x18] sm:$0xff]
    %v1703 = vld [vmem:[#allocation7] sm:$0x1]
    %v1705 = vlaneseq
    %v1706 = vshrl.u32 %v1705, 7
    %v1707 = vsub.s32 0, %v1706
    %v1708 = vrot.slane %v1703, %v1707
    %v1711 = vsel %vm119, %v1697, 0
    %v1714 = vsel %vm119, %v1698, 0
    %1716 = vmatprep.subr.mxu0 0.0
    %1717 = vmatpush1.msra.mxu0 %v1699
    %1718 = vmatprep.subr.mxu0 0.0
    %1719 = vmatpush1.msra.mxu0 %v1700
    %1720 = vmatprep.subr.mxu0 0.0
    %1721 = vmatpush1.msra.mxu0 %v1701
    %1722 = vmatprep.subr.mxu0 0.0
    %1723 = vmatpush1.msra.mxu0 %v1702
    %1724 = vmatprep.subr.mxu0 0.0
    %1725 = vmatpush1.msra.mxu0 0.0
    %1726 = vmatprep.subr.mxu0 0.0
    %1727 = vmatpush1.msra.mxu0 0.0
    %1728 = vmatprep.subr.mxu0 0.0
    %1729 = vmatpush1.msra.mxu0 0.0
    %1730 = vmatprep.subr.mxu0 0.0
    %1731 = vmatpush1.msra.mxu0 0.0
    %1732 = vmatprep.subr.mxu0 0.0
    %1733 = vmatpush1.msra.mxu0 0.0
    %1734 = vmatprep.subr.mxu0 0.0
    %1735 = vmatpush1.msra.mxu0 0.0
    %1736 = vmatprep.subr.mxu0 0.0
    %1737 = vmatpush1.msra.mxu0 0.0
    %1738 = vmatprep.subr.mxu0 0.0
    %1739 = vmatpush1.msra.mxu0 0.0
    %1740 = vmatprep.subr.mxu0 0.0
    %1741 = vmatpush1.msra.mxu0 0.0
    %1742 = vmatprep.subr.mxu0 0.0
    %1743 = vmatpush1.msra.mxu0 0.0
    %1744 = vmatprep.subr.mxu0 0.0
    %1745 = vmatpush1.msra.mxu0 0.0
    %1746 = vmatprep.subr.mxu0 0.0
    %1747 = vmatpush1.msra.mxu0 0.0
    %1748 = vmatprep.subr.mxu0 0.0
    %1749 = vmatpush1.msra.mxu0 0.0
    %1750 = vmatprep.subr.mxu0 0.0
    %1751 = vmatpush1.msra.mxu0 0.0
    %1752 = vmatprep.subr.mxu0 0.0
    %1753 = vmatpush1.msra.mxu0 0.0
    %1754 = vmatprep.subr.mxu0 0.0
    %1755 = vmatpush1.msra.mxu0 0.0
    %1756 = vmatprep.subr.mxu0 0.0
    %1757 = vmatpush1.msra.mxu0 0.0
    %1758 = vmatprep.subr.mxu0 0.0
    %1759 = vmatpush1.msra.mxu0 0.0
    %1760 = vmatprep.subr.mxu0 0.0
    %1761 = vmatpush1.msra.mxu0 0.0
    %1762 = vmatprep.subr.mxu0 0.0
    %1763 = vmatpush1.msra.mxu0 0.0
    %1764 = vmatprep.subr.mxu0 0.0
    %1765 = vmatpush1.msra.mxu0 0.0
    %1766 = vmatprep.subr.mxu0 0.0
    %1767 = vmatpush1.msra.mxu0 0.0
    %1768 = vmatprep.subr.mxu0 0.0
    %1769 = vmatpush1.msra.mxu0 0.0
    %1770 = vmatprep.subr.mxu0 0.0
    %1771 = vmatpush1.msra.mxu0 0.0
    %1772 = vmatprep.subr.mxu0 0.0
    %1773 = vmatpush1.msra.mxu0 0.0
    %1774 = vmatprep.subr.mxu0 0.0
    %1775 = vmatpush1.msra.mxu0 0.0
    %1776 = vmatprep.subr.mxu0 0.0
    %1777 = vmatpush1.msra.mxu0 0.0
    %1778 = vmatprep.subr.mxu0 0.0
    %1779 = vmatpush1.msra.mxu0 0.0
    %1780 = vmatprep.mubr.f32.mxu0 0.0
    %1781 = vmatmul.mubr.f32.gmra.mrb[0].mxu0 %v1711
    %v1782 = vpop.f32.mrb[0].mxu0
    %v1783 = vadd.f32 %v1708, %v1782
    %v1784 = vpop.f32.mrb[0].mxu0
    %1785 = vmatprep.mubr.f32.mxu0 0.0
    %1786 = vmatmul.mubr.f32.gmra.mrb[0].mxu0 %v1714
    %v1787 = vpop.f32.mrb[0].mxu0
    %v1788 = vadd.f32 %v1708, %v1787
    %v1789 = vpop.f32.mrb[0].mxu0
    %1790 = vdwg.mxu0
    %v1791 = vmax.f32 %v1783, 0.0
    %v1792 = vmax.f32 %v1788, 0.0
    %v1793 = vld [vmem:[%s8] sm:$0xff]
    %v1794 = vld [vmem:[%s8 + $0x8] sm:$0xff]
    %v1795 = vld [vmem:[%s8 + $0x10] sm:$0xff]
    %v1796 = vld [vmem:[%s8 + $0x18] sm:$0xff]
    %v1797 = vld [vmem:[%s8 + $0x20] sm:$0xff]
    %v1798 = vld [vmem:[%s8 + $0x28] sm:$0xff]
    %v1799 = vld [vmem:[%s8 + $0x30] sm:$0xff]
    %v1800 = vld [vmem:[%s8 + $0x38] sm:$0xff]
    %v1801 = vld [vmem:[#allocation8] sm:$0x1]
    %v1803 = vlaneseq
    %v1804 = vshrl.u32 %v1803, 7
    %v1805 = vsub.s32 0, %v1804
    %v1806 = vrot.slane %v1801, %v1805
    %vm1808 = vcmask 523264
    %v1810 = vsel %vm1808, %v1791, 0
    %v1813 = vsel %vm1808, %v1792, 0
    %1815 = vmatprep.subr.mxu0 0.0
    %1816 = vmatpush1.msra.mxu0 %v1793
    %1817 = vmatprep.subr.mxu0 0.0
    %1818 = vmatpush1.msra.mxu0 %v1794
    %1819 = vmatprep.subr.mxu0 0.0
    %1820 = vmatpush1.msra.mxu0 %v1795
    %1821 = vmatprep.subr.mxu0 0.0
    %1822 = vmatpush1.msra.mxu0 %v1796
    %1823 = vmatprep.subr.mxu0 0.0
    %1824 = vmatpush1.msra.mxu0 %v1797
    %1825 = vmatprep.subr.mxu0 0.0
    %1826 = vmatpush1.msra.mxu0 %v1798
    %1827 = vmatprep.subr.mxu0 0.0
    %1828 = vmatpush1.msra.mxu0 %v1799
    %1829 = vmatprep.subr.mxu0 0.0
    %1830 = vmatpush1.msra.mxu0 %v1800
    %1831 = vmatprep.subr.mxu0 0.0
    %1832 = vmatpush1.msra.mxu0 0.0
    %1833 = vmatprep.subr.mxu0 0.0
    %1834 = vmatpush1.msra.mxu0 0.0
    %1835 = vmatprep.subr.mxu0 0.0
    %1836 = vmatpush1.msra.mxu0 0.0
    %1837 = vmatprep.subr.mxu0 0.0
    %1838 = vmatpush1.msra.mxu0 0.0
    %1839 = vmatprep.subr.mxu0 0.0
    %1840 = vmatpush1.msra.mxu0 0.0
    %1841 = vmatprep.subr.mxu0 0.0
    %1842 = vmatpush1.msra.mxu0 0.0
    %1843 = vmatprep.subr.mxu0 0.0
    %1844 = vmatpush1.msra.mxu0 0.0
    %1845 = vmatprep.subr.mxu0 0.0
    %1846 = vmatpush1.msra.mxu0 0.0
    %1847 = vmatprep.subr.mxu0 0.0
    %1848 = vmatpush1.msra.mxu0 0.0
    %1849 = vmatprep.subr.mxu0 0.0
    %1850 = vmatpush1.msra.mxu0 0.0
    %1851 = vmatprep.subr.mxu0 0.0
    %1852 = vmatpush1.msra.mxu0 0.0
    %1853 = vmatprep.subr.mxu0 0.0
    %1854 = vmatpush1.msra.mxu0 0.0
    %1855 = vmatprep.subr.mxu0 0.0
    %1856 = vmatpush1.msra.mxu0 0.0
    %1857 = vmatprep.subr.mxu0 0.0
    %1858 = vmatpush1.msra.mxu0 0.0
    %1859 = vmatprep.subr.mxu0 0.0
    %1860 = vmatpush1.msra.mxu0 0.0
    %1861 = vmatprep.subr.mxu0 0.0
    %1862 = vmatpush1.msra.mxu0 0.0
    %1863 = vmatprep.subr.mxu0 0.0
    %1864 = vmatpush1.msra.mxu0 0.0
    %1865 = vmatprep.subr.mxu0 0.0
    %1866 = vmatpush1.msra.mxu0 0.0
    %1867 = vmatprep.subr.mxu0 0.0
    %1868 = vmatpush1.msra.mxu0 0.0
    %1869 = vmatprep.subr.mxu0 0.0
    %1870 = vmatpush1.msra.mxu0 0.0
    %1871 = vmatprep.subr.mxu0 0.0
    %1872 = vmatpush1.msra.mxu0 0.0
    %1873 = vmatprep.subr.mxu0 0.0
    %1874 = vmatpush1.msra.mxu0 0.0
    %1875 = vmatprep.subr.mxu0 0.0
    %1876 = vmatpush1.msra.mxu0 0.0
    %1877 = vmatprep.subr.mxu0 0.0
    %1878 = vmatpush1.msra.mxu0 0.0
    %1879 = vmatprep.mubr.f32.mxu0 0.0
    %1880 = vmatmul.mubr.f32.gmra.mrb[0].mxu0 %v1810
    %v1881 = vpop.f32.mrb[0].mxu0
    %v1882 = vadd.f32 %v1806, %v1881
    %v1883 = vpop.f32.mrb[0].mxu0
    %1884 = vmatprep.mubr.f32.mxu0 0.0
    %1885 = vmatmul.mubr.f32.gmra.mrb[0].mxu0 %v1813
    %v1886 = vpop.f32.mrb[0].mxu0
    %v1887 = vadd.f32 %v1806, %v1886
    %v1888 = vpop.f32.mrb[0].mxu0
    %1889 = vdwg.mxu0
    %v1890 = vadd.f32 %v1697, %v1882
    %v1891 = vadd.f32 %v1698, %v1887
    %v1892 = vld [vmem:[%s12] sm:$0x1]
    %v1893 = vld [vmem:[%s13] sm:$0x1]
    %v1894 = vsel %vm119, %v1890, 0.0
    %1895 = vadd.xlane.f32.xlu0 %v1894
    %v1896 = vpop.xlane.xlu0 %1895
    %v1897 = vsel %vm119, %v1891, 0.0
    %1898 = vadd.xlane.f32.xlu0 %v1897
    %v1899 = vpop.xlane.xlu0 %1898
    %v1900 = vmul.f32 %v1896, %v1662
    %v1901 = vmul.f32 %v1899, %v1662
    %v1902 = vsub.f32 %v1890, %v1900
    %v1903 = vsub.f32 %v1891, %v1901
    %v1904 = vmul.f32 %v1902, %v1902
    %v1905 = vmul.f32 %v1903, %v1903
    %v1906 = vsel %vm119, %v1904, 0.0
    %1907 = vadd.xlane.f32.xlu0 %v1906
    %v1908 = vpop.xlane.xlu0 %1907
    %v1909 = vsel %vm119, %v1905, 0.0
    %1910 = vadd.xlane.f32.xlu0 %v1909
    %v1911 = vpop.xlane.xlu0 %1910
    %v1912 = vmul.f32 %v1908, %v1662
    %v1913 = vmul.f32 %v1911, %v1662
    %v1914 = vadd.f32 %v1912, 1e-05
    %v1915 = vadd.f32 %v1913, 1e-05
    %v1916 = vrsqrt.pop %v1914
    %v1917 = vrsqrt.pop %v1915
    %v1918 = vmul.f32 %v1902, %v1916
    %v1919 = vmul.f32 %v1903, %v1917
    %v1921 = vlaneseq
    %v1922 = vshrl.u32 %v1921, 7
    %v1923 = vsub.s32 0, %v1922
    %v1924 = vrot.slane %v1892, %v1923
    %v1926 = vmul.f32 %v1918, %v1924
    %v1927 = vmul.f32 %v1919, %v1924
    %v1929 = vlaneseq
    %v1930 = vshrl.u32 %v1929, 7
    %v1931 = vsub.s32 0, %v1930
    %v1932 = vrot.slane %v1893, %v1931
    %v1934 = vadd.f32 %v1926, %v1932
    %v1935 = vadd.f32 %v1927, %v1932
    %v1936 = vld [vmem:[%s14] sm:$0xff]
    %v1937 = vld [vmem:[%s14 + $0x8] sm:$0xff]
    %v1938 = vld [vmem:[%s14 + $0x10] sm:$0xff]
    %v1939 = vld [vmem:[%s14 + $0x18] sm:$0xff]
    %v1940 = vld [vmem:[%s15] sm:$0x1]
    %v1942 = vlaneseq
    %v1943 = vshrl.u32 %v1942, 7
    %v1944 = vsub.s32 0, %v1943
    %v1945 = vrot.slane %v1940, %v1944
    %v1948 = vsel %vm119, %v1934, 0
    %v1951 = vsel %vm119, %v1935, 0
    %1953 = vmatprep.subr.mxu0 0.0
    %1954 = vmatpush1.msra.mxu0 %v1936
    %1955 = vmatprep.subr.mxu0 0.0
    %1956 = vmatpush1.msra.mxu0 %v1937
    %1957 = vmatprep.subr.mxu0 0.0
    %1958 = vmatpush1.msra.mxu0 %v1938
    %1959 = vmatprep.subr.mxu0 0.0
    %1960 = vmatpush1.msra.mxu0 %v1939
    %1961 = vmatprep.subr.mxu0 0.0
    %1962 = vmatpush1.msra.mxu0 0.0
    %1963 = vmatprep.subr.mxu0 0.0
    %1964 = vmatpush1.msra.mxu0 0.0
    %1965 = vmatprep.subr.mxu0 0.0
    %1966 = vmatpush1.msra.mxu0 0.0
    %1967 = vmatprep.subr.mxu0 0.0
    %1968 = vmatpush1.msra.mxu0 0.0
    %1969 = vmatprep.subr.mxu0 0.0
    %1970 = vmatpush1.msra.mxu0 0.0
    %1971 = vmatprep.subr.mxu0 0.0
    %1972 = vmatpush1.msra.mxu0 0.0
    %1973 = vmatprep.subr.mxu0 0.0
    %1974 = vmatpush1.msra.mxu0 0.0
    %1975 = vmatprep.subr.mxu0 0.0
    %1976 = vmatpush1.msra.mxu0 0.0
    %1977 = vmatprep.subr.mxu0 0.0
    %1978 = vmatpush1.msra.mxu0 0.0
    %1979 = vmatprep.subr.mxu0 0.0
    %1980 = vmatpush1.msra.mxu0 0.0
    %1981 = vmatprep.subr.mxu0 0.0
    %1982 = vmatpush1.msra.mxu0 0.0
    %1983 = vmatprep.subr.mxu0 0.0
    %1984 = vmatpush1.msra.mxu0 0.0
    %1985 = vmatprep.subr.mxu0 0.0
    %1986 = vmatpush1.msra.mxu0 0.0
    %1987 = vmatprep.subr.mxu0 0.0
    %1988 = vmatpush1.msra.mxu0 0.0
    %1989 = vmatprep.subr.mxu0 0.0
    %1990 = vmatpush1.msra.mxu0 0.0
    %1991 = vmatprep.subr.mxu0 0.0
    %1992 = vmatpush1.msra.mxu0 0.0
    %1993 = vmatprep.subr.mxu0 0.0
    %1994 = vmatpush1.msra.mxu0 0.0
    %1995 = vmatprep.subr.mxu0 0.0
    %1996 = vmatpush1.msra.mxu0 0.0
    %1997 = vmatprep.subr.mxu0 0.0
    %1998 = vmatpush1.msra.mxu0 0.0
    %1999 = vmatprep.subr.mxu0 0.0
    %2000 = vmatpush1.msra.mxu0 0.0
    %2001 = vmatprep.subr.mxu0 0.0
    %2002 = vmatpush1.msra.mxu0 0.0
    %2003 = vmatprep.subr.mxu0 0.0
    %2004 = vmatpush1.msra.mxu0 0.0
    %2005 = vmatprep.subr.mxu0 0.0
    %2006 = vmatpush1.msra.mxu0 0.0
    %2007 = vmatprep.subr.mxu0 0.0
    %2008 = vmatpush1.msra.mxu0 0.0
    %2009 = vmatprep.subr.mxu0 0.0
    %2010 = vmatpush1.msra.mxu0 0.0
    %2011 = vmatprep.subr.mxu0 0.0
    %2012 = vmatpush1.msra.mxu0 0.0
    %2013 = vmatprep.subr.mxu0 0.0
    %2014 = vmatpush1.msra.mxu0 0.0
    %2015 = vmatprep.subr.mxu0 0.0
    %2016 = vmatpush1.msra.mxu0 0.0
    %2017 = vmatprep.mubr.f32.mxu0 0.0
    %2018 = vmatmul.mubr.f32.gmra.mrb[0].mxu0 %v1948
    %v2019 = vpop.f32.mrb[0].mxu0
    %v2020 = vadd.f32 %v1945, %v2019
    %v2021 = vpop.f32.mrb[0].mxu0
    %2022 = vmatprep.mubr.f32.mxu0 0.0
    %2023 = vmatmul.mubr.f32.gmra.mrb[0].mxu0 %v1951
    %v2024 = vpop.f32.mrb[0].mxu0
    %v2025 = vadd.f32 %v1945, %v2024
    %v2026 = vpop.f32.mrb[0].mxu0
    %2027 = vdwg.mxu0
    %2028 = vst [vmem:[#allocation10] sm:$0xff] %v2020
    %2029 = vst [vmem:[#allocation10 + $0x8] sm:$0xff] %v2025
    // Predicated region
    $region82: #{tpu_custom_call.1} parent=1 // pred_check
      _
    $region83: #{tpu_custom_call.1} parent=1 // pred_check_branch
      %2031 = sbr.rel (0) target = $region85
    $region84: #{tpu_custom_call.1} parent=1 // pred_region
      %s2033 = ssub.s32 256, 256
      %2034 = vsyncadd [#allocation4], %s2033
      %s2035 = sshll.u32 [#allocation10], 4
      %s2036 = int_to_ptr.vmem [resolvable:$true] %s2035
      %2041 = dma.vmem_to_hbm [thread:$0]  %s2036, 256, %s16, [#allocation4], 128, 128, 8
    $region85: #{tpu_custom_call.1} parent=1 // pred_fallthru
      _
    // Predicated region
    $region86: #{tpu_custom_call.1} parent=1 // pred_check
      _
    $region87: #{tpu_custom_call.1} parent=1 // pred_check_branch
      %2043 = sbr.rel (0) target = $region89
    $region88: #{tpu_custom_call.1} parent=1 // pred_region
      %2044 = dma.done [#allocation4], 256
    $region89: #{tpu_custom_call.1} parent=1 // pred_fallthru
      _
    %2045 = vsyncpa [#allocation3], 1
    %2046 = vsyncpa [#allocation6], 1
    %2047 = vsyncpa [#allocation9], 1
    %2048 = vsyncpa [#allocation4], 1

</llo_original>
